<compile_context>
chip_gen: v6e
topology: v6e:2x2x1
jax: 0.10.0
libtpu: 0.0.40
codegen_flags: <defaults>
</compile_context>

<pallas_src>
import jax
import jax.numpy as jnp
import numpy as np
from jax import lax
from jax.experimental import pallas as pl
from jax.experimental.pallas import tpu as pltpu

# ----------------------- configuration (small, consistent with the module) ----
D_FEAT = 6          # d_feat
HIDDEN = 32         # hidden_size (small for the demo)
N_SAMPLES = 8       # n_samples (graph nodes / batch)
STEP_LEN = 8        # step_len (sequence length)

D_PAD = 16          # feature dim padded to 16 (K alignment for the gx0 matmul)

# bf16 weight-slab row offsets (all multiples of 16 = bf16 sublane packing)
OFF_WIH0 = 0        # 16 rows : W_ih0^T (rows 0:6 used)           [D, 4H]
OFF_RECL = 16       # 64 rows : left  half of block-diag W_rec    [2H, 4H]
OFF_RECR = 80       # 64 rows : right half of block-diag W_rec    [2H, 4H]
OFF_WIH1 = 144      # 32 rows : W_ih1^T                           [H, 4H]
OFF_WT = 176        # 32 rows : W_t^T  (lanes 0:H used)
OFF_WFC = 208       # 32 rows : W_fc^T (lanes 0:H used)
W_ROWS = 240

# f32 bias/vector-slab rows
ROW_B0, ROW_B1, ROW_BT, ROW_BFC, ROW_AL, ROW_AR, ROW_WOUT, ROW_BOUT = range(8)

VMEM_SPEC = pl.BlockSpec(memory_space=pltpu.MemorySpace.VMEM)


# ------------------------------- fused Pallas kernel ---------------------------
def _make_fused_kernel(T, N, H):
    """Fused LSTM(2) + GAT(1 head) + FC head.

    Inputs (all VMEM):
      x2d_ref: [T*N, D_PAD] f32   time-major input (rows t*N..t*N+N-1 = step t)
      w_ref:   [240, 4H]    bf16  packed weight slab (layout above)
      b_ref:   [8, 4H]      f32   packed bias / attention-vector slab
    Output:
      out_ref: [1, N] f32 (lane-dense)
    Scratch:
      hc_ref:  [N, 2H] f32  persistent combined hidden state [h0 | h1]
    """
    G = 4 * H

    def kernel(x2d_ref, w_ref, b_ref, out_ref, hc_ref):
        bf16 = jnp.bfloat16

        # ---- hoisted weight / bias loads (resident across the unroll) --------
        wih0 = w_ref[OFF_WIH0:OFF_WIH0 + D_PAD, :]                    # [16, 4H]
        # block-diag W_rec [2H, 8H]: one concat, outside the time loop
        w_rec = jnp.concatenate(
            [w_ref[OFF_RECL:OFF_RECL + 2 * H, :],
             w_ref[OFF_RECR:OFF_RECR + 2 * H, :]], axis=1)            # [2H, 8H]
        wih1 = w_ref[OFF_WIH1:OFF_WIH1 + H, :]                        # [H, 4H]
        b0 = b_ref[ROW_B0:ROW_B0 + 1, :]                              # [1, 4H]
        b1 = b_ref[ROW_B1:ROW_B1 + 1, :]                              # [1, 4H]

        # ---- layer-0 input projection for all timesteps: one MXU push --------
        gx0 = jnp.dot(x2d_ref[...].astype(bf16), wih0,
                      preferred_element_type=jnp.float32)             # [T*N, 4H]

        # lane mask selecting the tanh gate (PyTorch order i, f, g, o)
        lane = lax.broadcasted_iota(jnp.int32, (N, G), 1)
        tanh_lanes = (lane >= 2 * H) & (lane < 3 * H)

        def cell(g, c):
            # i/f/o gate columns were pre-scaled by 0.5 at init, so one tanh
            # pass gives tanh(x) for the g-gate and tanh(x/2) for i/f/o;
            # sigmoid(x) = 0.5*tanh(x/2) + 0.5 reconstructs the sigmoid lanes.
            y = jnp.tanh(g)
            act = jnp.where(tanh_lanes, y, 0.5 * y + 0.5)
            i = act[:, 0 * H:1 * H]
            f = act[:, 1 * H:2 * H]
            gg = act[:, 2 * H:3 * H]
            o = act[:, 3 * H:4 * H]
            c_new = f * c + i * gg
            return o * jnp.tanh(c_new), c_new

        hc_ref[...] = jnp.zeros((N, 2 * H), jnp.float32)
        c0 = jnp.zeros((N, H), jnp.float32)
        c1 = jnp.zeros((N, H), jnp.float32)
        h1 = jnp.zeros((N, H), jnp.float32)
        for t in range(T):                     # static unroll; T compile-time small
            # one 8H-wide push: [h0 | h1] @ block-diag(Whh0^T, Whh1^T)
            rec = jnp.dot(hc_ref[...].astype(bf16), w_rec,
                          preferred_element_type=jnp.float32)         # [N, 8H]
            g0 = gx0[t * N:(t + 1) * N, :] + rec[:, :G] + b0
            h0, c0 = cell(g0, c0)
            g1 = (jnp.dot(h0.astype(bf16), wih1,
                          preferred_element_type=jnp.float32)
                  + rec[:, G:] + b1)
            h1, c1 = cell(g1, c1)
            hc_ref[:, 0:H] = h0                # lane-slice writes, no concat
            hc_ref[:, H:2 * H] = h1

        hidden0 = h1                           # == out[:, -1, :] of top LSTM layer
        hid_bf = hidden0.astype(bf16)

        # ---- GAT attention (num_head = 1) -------------------------------------
        wt = w_ref[OFF_WT:OFF_WT + H, :]       # [H, 4H], lanes H:4H are zero-pad
        wfc = w_ref[OFF_WFC:OFF_WFC + H, :]
        bt = b_ref[ROW_BT:ROW_BT + 1, :]       # [1, 4H], zero-padded past H
        bfc = b_ref[ROW_BFC:ROW_BFC + 1, :]
        a_l = b_ref[ROW_AL:ROW_AL + 1, :]      # [1, 4H], a[:, :H] in lanes 0:H
        a_r = b_ref[ROW_AR:ROW_AR + 1, :]      # [1, 4H], a[:, H:] in lanes 0:H
        w_out = b_ref[ROW_WOUT:ROW_WOUT + 1, :]
        b_out = b_ref[ROW_BOUT:ROW_BOUT + 1, 0:1]

        # ht padded to 4H lanes; pad lanes are exactly zero (zero weight + zero bias)
        ht = jnp.dot(hid_bf, wt, preferred_element_type=jnp.float32) + bt   # [N, 4H]
        ht_bf = ht.astype(bf16)
        # s[i, j] = a_r . ht[i] + a_l . ht[j]
        left_row = lax.dot_general(a_l.astype(bf16), ht_bf,
                                   (((1,), (1,)), ((), ())),
                                   preferred_element_type=jnp.float32)      # [1, N]
        right_col = jnp.sum(ht * a_r, axis=1, keepdims=True)                # [N, 1]
        scores = right_col + left_row                                        # [N, N]
        scores = jnp.where(scores >= 0, scores, 0.01 * scores)               # LeakyReLU
        m = jnp.max(scores, axis=1, keepdims=True)                           # softmax dim=1
        e = jnp.exp(scores - m)
        inv = pl.reciprocal(jnp.sum(e, axis=1, keepdims=True), approx=True)
        att = e * inv
        gat_out = jnp.dot(att.astype(bf16), hid_bf,
                          preferred_element_type=jnp.float32)                # [N, H]

        # ---- residual + fc -> LeakyReLU -> fc_out (lane-dense [1, N]) ---------
        hidden = gat_out + hidden0
        fc = jnp.dot(hidden.astype(bf16), wfc,
                     preferred_element_type=jnp.float32) + bfc               # [N, 4H]
        fc = jnp.where(fc >= 0, fc, 0.01 * fc)
        out_row = lax.dot_general(w_out.astype(bf16), fc.astype(bf16),
                                  (((1,), (1,)), ((), ())),
                                  preferred_element_type=jnp.float32)        # [1, N]
        out_ref[...] = out_row + b_out

    return kernel


# ------------------------------- params ----------------------------------------
def init_raw_params(key):
    """PyTorch-layout parameters (used by the pure-JAX reference)."""
    ks = jax.random.split(key, 12)
    s = 0.1
    p = {}
    p["W_ih0"] = jax.random.normal(ks[0], (4 * HIDDEN, D_FEAT), jnp.float32) * s
    p["W_hh0"] = jax.random.normal(ks[1], (4 * HIDDEN, HIDDEN), jnp.float32) * s
    p["b0"] = jax.random.normal(ks[2], (4 * HIDDEN,), jnp.float32) * s
    p["W_ih1"] = jax.random.normal(ks[3], (4 * HIDDEN, HIDDEN), jnp.float32) * s
    p["W_hh1"] = jax.random.normal(ks[4], (4 * HIDDEN, HIDDEN), jnp.float32) * s
    p["b1"] = jax.random.normal(ks[5], (4 * HIDDEN,), jnp.float32) * s
    p["W_t"] = jax.random.normal(ks[6], (HIDDEN, HIDDEN), jnp.float32) * s
    p["b_t"] = jax.random.normal(ks[7], (HIDDEN,), jnp.float32) * s
    p["a"] = jax.random.normal(ks[8], (1, 2 * HIDDEN), jnp.float32)
    p["W_fc"] = jax.random.normal(ks[9], (HIDDEN, HIDDEN), jnp.float32) * s
    p["b_fc"] = jax.random.normal(ks[10], (HIDDEN,), jnp.float32) * s
    p["W_out"] = jax.random.normal(ks[11], (1, HIDDEN), jnp.float32) * s
    p["b_out"] = jnp.zeros((1,), jnp.float32)
    return p


def to_kernel_params(p):
    """One-time packing into the two kernel slabs (done at init, not per call)."""
    H = HIDDEN
    idx = np.arange(4 * H)
    # single-tanh trick: pre-scale i/f/o gate columns (all but the g-gate) by 0.5
    gate_scale = np.where((idx >= 2 * H) & (idx < 3 * H), 1.0, 0.5).astype(np.float32)

    def npa(a):
        return np.asarray(a, dtype=np.float32)

    wih0_t = npa(p["W_ih0"]).T * gate_scale[None, :]       # [D, 4H]
    whh0_t = npa(p["W_hh0"]).T * gate_scale[None, :]       # [H, 4H]
    wih1_t = npa(p["W_ih1"]).T * gate_scale[None, :]       # [H, 4H]
    whh1_t = npa(p["W_hh1"]).T * gate_scale[None, :]       # [H, 4H]
    b0 = npa(p["b0"]) * gate_scale
    b1 = npa(p["b1"]) * gate_scale

    # bf16 weight slab [240, 4H]
    ws = np.zeros((W_ROWS, 4 * H), np.float32)
    ws[OFF_WIH0:OFF_WIH0 + D_FEAT, :] = wih0_t
    ws[OFF_RECL:OFF_RECL + H, :] = whh0_t                  # W_rec left half, top block
    ws[OFF_RECR + H:OFF_RECR + 2 * H, :] = whh1_t          # W_rec right half, bottom block
    ws[OFF_WIH1:OFF_WIH1 + H, :] = wih1_t
    ws[OFF_WT:OFF_WT + H, 0:H] = npa(p["W_t"]).T
    ws[OFF_WFC:OFF_WFC + H, 0:H] = npa(p["W_fc"]).T

    # f32 bias / vector slab [8, 4H]
    bs = np.zeros((8, 4 * H), np.float32)
    bs[ROW_B0, :] = b0
    bs[ROW_B1, :] = b1
    bs[ROW_BT, 0:H] = npa(p["b_t"])
    bs[ROW_BFC, 0:H] = npa(p["b_fc"])
    bs[ROW_AL, 0:H] = npa(p["a"])[0, 0:H]
    bs[ROW_AR, 0:H] = npa(p["a"])[0, H:2 * H]
    bs[ROW_WOUT, 0:H] = npa(p["W_out"])[0, :]
    bs[ROW_BOUT, 0] = npa(p["b_out"])[0]

    return jnp.asarray(ws, jnp.bfloat16), jnp.asarray(bs, jnp.float32)


# ------------------------------- wrapper ----------------------------------------
@jax.jit
def gat_model_forward(x, wslab, bslab):
    """x: [N, T, D] float32 (PyTorch batch_first). Returns [N] (fc_out squeezed)."""
    N, T, D = x.shape
    # time-major, flattened: row t*N + n is (sample n, step t); pad features to 16.
    x2d = jnp.transpose(x, (1, 0, 2)).reshape(T * N, D)
    x2d = jnp.pad(x2d, ((0, 0), (0, D_PAD - D)))

    out = pl.pallas_call(
        _make_fused_kernel(T, N, HIDDEN),
        out_shape=jax.ShapeDtypeStruct((1, N), jnp.float32),
        in_specs=[VMEM_SPEC, VMEM_SPEC, VMEM_SPEC],
        out_specs=VMEM_SPEC,
        scratch_shapes=[pltpu.VMEM((N, 2 * HIDDEN), jnp.float32)],
    )(x2d, wslab, bslab)
    return out[0, :]                           # .squeeze()


# ------------------------------- reference ---------------------------------------
def reference_forward(x, p):
    """Pure-JAX f32 reference with the original module's semantics."""
    N, T, _ = x.shape
    H = HIDDEN

    def cell(x_t, h, c, Wih, Whh, b):
        g = x_t @ Wih.T + h @ Whh.T + b
        i = jax.nn.sigmoid(g[:, :H])
        f = jax.nn.sigmoid(g[:, H:2 * H])
        gg = jnp.tanh(g[:, 2 * H:3 * H])
        o = jax.nn.sigmoid(g[:, 3 * H:])
        c = f * c + i * gg
        return o * jnp.tanh(c), c

    h0 = c0 = h1 = c1 = jnp.zeros((N, H), jnp.float32)
    for t in range(T):
        h0, c0 = cell(x[:, t, :], h0, c0, p["W_ih0"], p["W_hh0"], p["b0"])
        h1, c1 = cell(h0, h1, c1, p["W_ih1"], p["W_hh1"], p["b1"])
    hidden0 = h1
    ht = hidden0 @ p["W_t"].T + p["b_t"]
    a_l, a_r = p["a"][:, :H], p["a"][:, H:]
    scores = (ht @ a_r.T) + (ht @ a_l.T).T
    scores = jnp.where(scores >= 0, scores, 0.01 * scores)
    att = jax.nn.softmax(scores, axis=1)
    hidden = att @ hidden0 + hidden0
    fc = hidden @ p["W_fc"].T + p["b_fc"]
    fc = jnp.where(fc >= 0, fc, 0.01 * fc)
    return (fc @ p["W_out"].T + p["b_out"])[:, 0]


if __name__ == "__main__":
    key = jax.random.PRNGKey(0)
    kx, kp_key = jax.random.split(key)
    x = jax.random.normal(kx, (N_SAMPLES, STEP_LEN, D_FEAT), jnp.float32)

    raw = init_raw_params(kp_key)
    wslab, bslab = to_kernel_params(raw)

    out = gat_model_forward(x, wslab, bslab)
    out = jax.block_until_ready(out)

    ref = reference_forward(x, raw)
    # bf16 MXU operands + approx softmax reciprocal => ~1e-3 deviation vs f32 ref.
    np.testing.assert_allclose(np.asarray(out), np.asarray(ref),
                               rtol=1e-2, atol=1e-2)
    print("KERNEL_OK")
</pallas_src>

<mosaic_0001>
module attributes {stable_mosaic.version = 11 : i64} {
  func.func @kernel(%arg0: memref<64x16xf32, #tpu.memory_space<vmem>>, %arg1: memref<240x128xbf16, #tpu.memory_space<vmem>>, %arg2: memref<8x128xf32, #tpu.memory_space<vmem>>, %arg3: memref<1x8xf32, #tpu.memory_space<vmem>>, %arg4: memref<8x64xf32, #tpu.memory_space<vmem>>) attributes {dimension_semantics = [], scalar_prefetch = 0 : i64, scratch_operands = 1 : i64, tpu.core_type = #tpu.core_type<tc>} {
    %c0 = arith.constant 0 : index
    %c0_0 = arith.constant 0 : index
    %0 = vector.load %arg1[%c0, %c0_0] : memref<240x128xbf16, #tpu.memory_space<vmem>>, vector<16x128xbf16>
    %c16 = arith.constant 16 : index
    %c0_1 = arith.constant 0 : index
    %1 = vector.load %arg1[%c16, %c0_1] : memref<240x128xbf16, #tpu.memory_space<vmem>>, vector<64x128xbf16>
    %c80 = arith.constant 80 : index
    %c0_2 = arith.constant 0 : index
    %2 = vector.load %arg1[%c80, %c0_2] : memref<240x128xbf16, #tpu.memory_space<vmem>>, vector<64x128xbf16>
    %3 = tpu.concatenate %1, %2 in 1 : vector<64x128xbf16>, vector<64x128xbf16> -> vector<64x256xbf16>
    %c144 = arith.constant 144 : index
    %c0_3 = arith.constant 0 : index
    %4 = vector.load %arg1[%c144, %c0_3] : memref<240x128xbf16, #tpu.memory_space<vmem>>, vector<32x128xbf16>
    %c0_4 = arith.constant 0 : index
    %c0_5 = arith.constant 0 : index
    %5 = vector.load %arg2[%c0_4, %c0_5] : memref<8x128xf32, #tpu.memory_space<vmem>>, vector<1x128xf32>
    %c1 = arith.constant 1 : index
    %c0_6 = arith.constant 0 : index
    %6 = vector.load %arg2[%c1, %c0_6] : memref<8x128xf32, #tpu.memory_space<vmem>>, vector<1x128xf32>
    %c0_7 = arith.constant 0 : index
    %c0_8 = arith.constant 0 : index
    %7 = vector.load %arg0[%c0_7, %c0_8] : memref<64x16xf32, #tpu.memory_space<vmem>>, vector<64x16xf32>
    %8 = arith.truncf %7 : vector<64x16xf32> to vector<64x16xbf16>
    %cst = arith.constant dense<0.000000e+00> : vector<64x128xf32>
    %9 = tpu.matmul %8, %0, %cst {dimension_numbers = #tpu.dot_dimension_numbers<[1], [0], [0], [1], [0, 0, 1, 1], [], []>} : vector<64x16xbf16>, vector<16x128xbf16>, vector<64x128xf32> -> vector<64x128xf32>
    %10 = tpu.iota {dimensions = array<i32: 1>} : vector<8x128xi32>
    %c64_i32 = arith.constant 64 : i32
    %11 = vector.broadcast %c64_i32 : i32 to vector<8x128xi32>
    %12 = arith.cmpi sge, %10, %11 : vector<8x128xi32>
    %c96_i32 = arith.constant 96 : i32
    %13 = vector.broadcast %c96_i32 : i32 to vector<8x128xi32>
    %14 = arith.cmpi slt, %10, %13 : vector<8x128xi32>
    %15 = arith.andi %12, %14 : vector<8x128xi1>
    %cst_9 = arith.constant 0.000000e+00 : f32
    %16 = vector.broadcast %cst_9 : f32 to vector<8x64xf32>
    %c0_10 = arith.constant 0 : index
    %c0_11 = arith.constant 0 : index
    %17 = vector.load %arg4[%c0_10, %c0_11] : memref<8x64xf32, #tpu.memory_space<vmem>>, vector<8x64xf32>
    tpu.vector_store %arg4[%c0_10, %c0_11], %16 {strides = array<i32>} : memref<8x64xf32, #tpu.memory_space<vmem>>, vector<8x64xf32>,
    %cst_12 = arith.constant 0.000000e+00 : f32
    %18 = vector.broadcast %cst_12 : f32 to vector<8x32xf32>
    %cst_13 = arith.constant 0.000000e+00 : f32
    %19 = vector.broadcast %cst_13 : f32 to vector<8x32xf32>
    %c0_14 = arith.constant 0 : index
    %c0_15 = arith.constant 0 : index
    %20 = vector.load %arg4[%c0_14, %c0_15] : memref<8x64xf32, #tpu.memory_space<vmem>>, vector<8x64xf32>
    %21 = arith.truncf %20 : vector<8x64xf32> to vector<8x64xbf16>
    %cst_16 = arith.constant dense<0.000000e+00> : vector<8x256xf32>
    %22 = tpu.matmul %21, %3, %cst_16 {dimension_numbers = #tpu.dot_dimension_numbers<[1], [0], [0], [1], [0, 0, 1, 1], [], []>} : vector<8x64xbf16>, vector<64x256xbf16>, vector<8x256xf32> -> vector<8x256xf32>
    %23 = vector.extract_strided_slice %9 {offsets = [0, 0], sizes = [8, 128], strides = [1, 1]} : vector<64x128xf32> to vector<8x128xf32>
    %24 = vector.extract_strided_slice %22 {offsets = [0, 0], sizes = [8, 128], strides = [1, 1]} : vector<8x256xf32> to vector<8x128xf32>
    %25 = arith.addf %23, %24 : vector<8x128xf32>
    %26 = vector.broadcast %5 : vector<1x128xf32> to vector<8x128xf32>
    %27 = arith.addf %25, %26 : vector<8x128xf32>
    %28 = math.tanh %27 : vector<8x128xf32>
    %cst_17 = arith.constant 5.000000e-01 : f32
    %29 = vector.broadcast %cst_17 : f32 to vector<8x128xf32>
    %30 = arith.mulf %29, %28 : vector<8x128xf32>
    %cst_18 = arith.constant 5.000000e-01 : f32
    %31 = vector.broadcast %cst_18 : f32 to vector<8x128xf32>
    %32 = arith.addf %30, %31 : vector<8x128xf32>
    %33 = arith.select %15, %28, %32 : vector<8x128xi1>, vector<8x128xf32>
    %34 = vector.extract_strided_slice %33 {offsets = [0, 0], sizes = [8, 32], strides = [1, 1]} : vector<8x128xf32> to vector<8x32xf32>
    %35 = vector.extract_strided_slice %33 {offsets = [0, 32], sizes = [8, 32], strides = [1, 1]} : vector<8x128xf32> to vector<8x32xf32>
    %36 = vector.extract_strided_slice %33 {offsets = [0, 64], sizes = [8, 32], strides = [1, 1]} : vector<8x128xf32> to vector<8x32xf32>
    %37 = vector.extract_strided_slice %33 {offsets = [0, 96], sizes = [8, 32], strides = [1, 1]} : vector<8x128xf32> to vector<8x32xf32>
    %38 = arith.mulf %35, %18 : vector<8x32xf32>
    %39 = arith.mulf %34, %36 : vector<8x32xf32>
    %40 = arith.addf %38, %39 : vector<8x32xf32>
    %41 = math.tanh %40 : vector<8x32xf32>
    %42 = arith.mulf %37, %41 : vector<8x32xf32>
    %43 = arith.truncf %42 : vector<8x32xf32> to vector<8x32xbf16>
    %cst_19 = arith.constant dense<0.000000e+00> : vector<8x128xf32>
    %44 = tpu.matmul %43, %4, %cst_19 {dimension_numbers = #tpu.dot_dimension_numbers<[1], [0], [0], [1], [0, 0, 1, 1], [], []>} : vector<8x32xbf16>, vector<32x128xbf16>, vector<8x128xf32> -> vector<8x128xf32>
    %45 = vector.extract_strided_slice %22 {offsets = [0, 128], sizes = [8, 128], strides = [1, 1]} : vector<8x256xf32> to vector<8x128xf32>
    %46 = arith.addf %44, %45 : vector<8x128xf32>
    %47 = vector.broadcast %6 : vector<1x128xf32> to vector<8x128xf32>
    %48 = arith.addf %46, %47 : vector<8x128xf32>
    %49 = math.tanh %48 : vector<8x128xf32>
    %cst_20 = arith.constant 5.000000e-01 : f32
    %50 = vector.broadcast %cst_20 : f32 to vector<8x128xf32>
    %51 = arith.mulf %50, %49 : vector<8x128xf32>
    %cst_21 = arith.constant 5.000000e-01 : f32
    %52 = vector.broadcast %cst_21 : f32 to vector<8x128xf32>
    %53 = arith.addf %51, %52 : vector<8x128xf32>
    %54 = arith.select %15, %49, %53 : vector<8x128xi1>, vector<8x128xf32>
    %55 = vector.extract_strided_slice %54 {offsets = [0, 0], sizes = [8, 32], strides = [1, 1]} : vector<8x128xf32> to vector<8x32xf32>
    %56 = vector.extract_strided_slice %54 {offsets = [0, 32], sizes = [8, 32], strides = [1, 1]} : vector<8x128xf32> to vector<8x32xf32>
    %57 = vector.extract_strided_slice %54 {offsets = [0, 64], sizes = [8, 32], strides = [1, 1]} : vector<8x128xf32> to vector<8x32xf32>
    %58 = vector.extract_strided_slice %54 {offsets = [0, 96], sizes = [8, 32], strides = [1, 1]} : vector<8x128xf32> to vector<8x32xf32>
    %59 = arith.mulf %56, %19 : vector<8x32xf32>
    %60 = arith.mulf %55, %57 : vector<8x32xf32>
    %61 = arith.addf %59, %60 : vector<8x32xf32>
    %62 = math.tanh %61 : vector<8x32xf32>
    %63 = arith.mulf %58, %62 : vector<8x32xf32>
    %c0_22 = arith.constant 0 : index
    %c0_23 = arith.constant 0 : index
    %64 = vector.load %arg4[%c0_22, %c0_23] : memref<8x64xf32, #tpu.memory_space<vmem>>, vector<8x32xf32>
    tpu.vector_store %arg4[%c0_22, %c0_23], %42 {strides = array<i32>} : memref<8x64xf32, #tpu.memory_space<vmem>>, vector<8x32xf32>,
    %c0_24 = arith.constant 0 : index
    %c32 = arith.constant 32 : index
    %65 = vector.load %arg4[%c0_24, %c32] : memref<8x64xf32, #tpu.memory_space<vmem>>, vector<8x32xf32>
    tpu.vector_store %arg4[%c0_24, %c32], %63 {strides = array<i32>} : memref<8x64xf32, #tpu.memory_space<vmem>>, vector<8x32xf32>,
    %c0_25 = arith.constant 0 : index
    %c0_26 = arith.constant 0 : index
    %66 = vector.load %arg4[%c0_25, %c0_26] : memref<8x64xf32, #tpu.memory_space<vmem>>, vector<8x64xf32>
    %67 = arith.truncf %66 : vector<8x64xf32> to vector<8x64xbf16>
    %cst_27 = arith.constant dense<0.000000e+00> : vector<8x256xf32>
    %68 = tpu.matmul %67, %3, %cst_27 {dimension_numbers = #tpu.dot_dimension_numbers<[1], [0], [0], [1], [0, 0, 1, 1], [], []>} : vector<8x64xbf16>, vector<64x256xbf16>, vector<8x256xf32> -> vector<8x256xf32>
    %69 = vector.extract_strided_slice %9 {offsets = [8, 0], sizes = [8, 128], strides = [1, 1]} : vector<64x128xf32> to vector<8x128xf32>
    %70 = vector.extract_strided_slice %68 {offsets = [0, 0], sizes = [8, 128], strides = [1, 1]} : vector<8x256xf32> to vector<8x128xf32>
    %71 = arith.addf %69, %70 : vector<8x128xf32>
    %72 = vector.broadcast %5 : vector<1x128xf32> to vector<8x128xf32>
    %73 = arith.addf %71, %72 : vector<8x128xf32>
    %74 = math.tanh %73 : vector<8x128xf32>
    %cst_28 = arith.constant 5.000000e-01 : f32
    %75 = vector.broadcast %cst_28 : f32 to vector<8x128xf32>
    %76 = arith.mulf %75, %74 : vector<8x128xf32>
    %cst_29 = arith.constant 5.000000e-01 : f32
    %77 = vector.broadcast %cst_29 : f32 to vector<8x128xf32>
    %78 = arith.addf %76, %77 : vector<8x128xf32>
    %79 = arith.select %15, %74, %78 : vector<8x128xi1>, vector<8x128xf32>
    %80 = vector.extract_strided_slice %79 {offsets = [0, 0], sizes = [8, 32], strides = [1, 1]} : vector<8x128xf32> to vector<8x32xf32>
    %81 = vector.extract_strided_slice %79 {offsets = [0, 32], sizes = [8, 32], strides = [1, 1]} : vector<8x128xf32> to vector<8x32xf32>
    %82 = vector.extract_strided_slice %79 {offsets = [0, 64], sizes = [8, 32], strides = [1, 1]} : vector<8x128xf32> to vector<8x32xf32>
    %83 = vector.extract_strided_slice %79 {offsets = [0, 96], sizes = [8, 32], strides = [1, 1]} : vector<8x128xf32> to vector<8x32xf32>
    %84 = arith.mulf %81, %40 : vector<8x32xf32>
    %85 = arith.mulf %80, %82 : vector<8x32xf32>
    %86 = arith.addf %84, %85 : vector<8x32xf32>
    %87 = math.tanh %86 : vector<8x32xf32>
    %88 = arith.mulf %83, %87 : vector<8x32xf32>
    %89 = arith.truncf %88 : vector<8x32xf32> to vector<8x32xbf16>
    %cst_30 = arith.constant dense<0.000000e+00> : vector<8x128xf32>
    %90 = tpu.matmul %89, %4, %cst_30 {dimension_numbers = #tpu.dot_dimension_numbers<[1], [0], [0], [1], [0, 0, 1, 1], [], []>} : vector<8x32xbf16>, vector<32x128xbf16>, vector<8x128xf32> -> vector<8x128xf32>
    %91 = vector.extract_strided_slice %68 {offsets = [0, 128], sizes = [8, 128], strides = [1, 1]} : vector<8x256xf32> to vector<8x128xf32>
    %92 = arith.addf %90, %91 : vector<8x128xf32>
    %93 = vector.broadcast %6 : vector<1x128xf32> to vector<8x128xf32>
    %94 = arith.addf %92, %93 : vector<8x128xf32>
    %95 = math.tanh %94 : vector<8x128xf32>
    %cst_31 = arith.constant 5.000000e-01 : f32
    %96 = vector.broadcast %cst_31 : f32 to vector<8x128xf32>
    %97 = arith.mulf %96, %95 : vector<8x128xf32>
    %cst_32 = arith.constant 5.000000e-01 : f32
    %98 = vector.broadcast %cst_32 : f32 to vector<8x128xf32>
    %99 = arith.addf %97, %98 : vector<8x128xf32>
    %100 = arith.select %15, %95, %99 : vector<8x128xi1>, vector<8x128xf32>
    %101 = vector.extract_strided_slice %100 {offsets = [0, 0], sizes = [8, 32], strides = [1, 1]} : vector<8x128xf32> to vector<8x32xf32>
    %102 = vector.extract_strided_slice %100 {offsets = [0, 32], sizes = [8, 32], strides = [1, 1]} : vector<8x128xf32> to vector<8x32xf32>
    %103 = vector.extract_strided_slice %100 {offsets = [0, 64], sizes = [8, 32], strides = [1, 1]} : vector<8x128xf32> to vector<8x32xf32>
    %104 = vector.extract_strided_slice %100 {offsets = [0, 96], sizes = [8, 32], strides = [1, 1]} : vector<8x128xf32> to vector<8x32xf32>
    %105 = arith.mulf %102, %61 : vector<8x32xf32>
    %106 = arith.mulf %101, %103 : vector<8x32xf32>
    %107 = arith.addf %105, %106 : vector<8x32xf32>
    %108 = math.tanh %107 : vector<8x32xf32>
    %109 = arith.mulf %104, %108 : vector<8x32xf32>
    %c0_33 = arith.constant 0 : index
    %c0_34 = arith.constant 0 : index
    %110 = vector.load %arg4[%c0_33, %c0_34] : memref<8x64xf32, #tpu.memory_space<vmem>>, vector<8x32xf32>
    tpu.vector_store %arg4[%c0_33, %c0_34], %88 {strides = array<i32>} : memref<8x64xf32, #tpu.memory_space<vmem>>, vector<8x32xf32>,
    %c0_35 = arith.constant 0 : index
    %c32_36 = arith.constant 32 : index
    %111 = vector.load %arg4[%c0_35, %c32_36] : memref<8x64xf32, #tpu.memory_space<vmem>>, vector<8x32xf32>
    tpu.vector_store %arg4[%c0_35, %c32_36], %109 {strides = array<i32>} : memref<8x64xf32, #tpu.memory_space<vmem>>, vector<8x32xf32>,
    %c0_37 = arith.constant 0 : index
    %c0_38 = arith.constant 0 : index
    %112 = vector.load %arg4[%c0_37, %c0_38] : memref<8x64xf32, #tpu.memory_space<vmem>>, vector<8x64xf32>
    %113 = arith.truncf %112 : vector<8x64xf32> to vector<8x64xbf16>
    %cst_39 = arith.constant dense<0.000000e+00> : vector<8x256xf32>
    %114 = tpu.matmul %113, %3, %cst_39 {dimension_numbers = #tpu.dot_dimension_numbers<[1], [0], [0], [1], [0, 0, 1, 1], [], []>} : vector<8x64xbf16>, vector<64x256xbf16>, vector<8x256xf32> -> vector<8x256xf32>
    %115 = vector.extract_strided_slice %9 {offsets = [16, 0], sizes = [8, 128], strides = [1, 1]} : vector<64x128xf32> to vector<8x128xf32>
    %116 = vector.extract_strided_slice %114 {offsets = [0, 0], sizes = [8, 128], strides = [1, 1]} : vector<8x256xf32> to vector<8x128xf32>
    %117 = arith.addf %115, %116 : vector<8x128xf32>
    %118 = vector.broadcast %5 : vector<1x128xf32> to vector<8x128xf32>
    %119 = arith.addf %117, %118 : vector<8x128xf32>
    %120 = math.tanh %119 : vector<8x128xf32>
    %cst_40 = arith.constant 5.000000e-01 : f32
    %121 = vector.broadcast %cst_40 : f32 to vector<8x128xf32>
    %122 = arith.mulf %121, %120 : vector<8x128xf32>
    %cst_41 = arith.constant 5.000000e-01 : f32
    %123 = vector.broadcast %cst_41 : f32 to vector<8x128xf32>
    %124 = arith.addf %122, %123 : vector<8x128xf32>
    %125 = arith.select %15, %120, %124 : vector<8x128xi1>, vector<8x128xf32>
    %126 = vector.extract_strided_slice %125 {offsets = [0, 0], sizes = [8, 32], strides = [1, 1]} : vector<8x128xf32> to vector<8x32xf32>
    %127 = vector.extract_strided_slice %125 {offsets = [0, 32], sizes = [8, 32], strides = [1, 1]} : vector<8x128xf32> to vector<8x32xf32>
    %128 = vector.extract_strided_slice %125 {offsets = [0, 64], sizes = [8, 32], strides = [1, 1]} : vector<8x128xf32> to vector<8x32xf32>
    %129 = vector.extract_strided_slice %125 {offsets = [0, 96], sizes = [8, 32], strides = [1, 1]} : vector<8x128xf32> to vector<8x32xf32>
    %130 = arith.mulf %127, %86 : vector<8x32xf32>
    %131 = arith.mulf %126, %128 : vector<8x32xf32>
    %132 = arith.addf %130, %131 : vector<8x32xf32>
    %133 = math.tanh %132 : vector<8x32xf32>
    %134 = arith.mulf %129, %133 : vector<8x32xf32>
    %135 = arith.truncf %134 : vector<8x32xf32> to vector<8x32xbf16>
    %cst_42 = arith.constant dense<0.000000e+00> : vector<8x128xf32>
    %136 = tpu.matmul %135, %4, %cst_42 {dimension_numbers = #tpu.dot_dimension_numbers<[1], [0], [0], [1], [0, 0, 1, 1], [], []>} : vector<8x32xbf16>, vector<32x128xbf16>, vector<8x128xf32> -> vector<8x128xf32>
    %137 = vector.extract_strided_slice %114 {offsets = [0, 128], sizes = [8, 128], strides = [1, 1]} : vector<8x256xf32> to vector<8x128xf32>
    %138 = arith.addf %136, %137 : vector<8x128xf32>
    %139 = vector.broadcast %6 : vector<1x128xf32> to vector<8x128xf32>
    %140 = arith.addf %138, %139 : vector<8x128xf32>
    %141 = math.tanh %140 : vector<8x128xf32>
    %cst_43 = arith.constant 5.000000e-01 : f32
    %142 = vector.broadcast %cst_43 : f32 to vector<8x128xf32>
    %143 = arith.mulf %142, %141 : vector<8x128xf32>
    %cst_44 = arith.constant 5.000000e-01 : f32
    %144 = vector.broadcast %cst_44 : f32 to vector<8x128xf32>
    %145 = arith.addf %143, %144 : vector<8x128xf32>
    %146 = arith.select %15, %141, %145 : vector<8x128xi1>, vector<8x128xf32>
    %147 = vector.extract_strided_slice %146 {offsets = [0, 0], sizes = [8, 32], strides = [1, 1]} : vector<8x128xf32> to vector<8x32xf32>
    %148 = vector.extract_strided_slice %146 {offsets = [0, 32], sizes = [8, 32], strides = [1, 1]} : vector<8x128xf32> to vector<8x32xf32>
    %149 = vector.extract_strided_slice %146 {offsets = [0, 64], sizes = [8, 32], strides = [1, 1]} : vector<8x128xf32> to vector<8x32xf32>
    %150 = vector.extract_strided_slice %146 {offsets = [0, 96], sizes = [8, 32], strides = [1, 1]} : vector<8x128xf32> to vector<8x32xf32>
    %151 = arith.mulf %148, %107 : vector<8x32xf32>
    %152 = arith.mulf %147, %149 : vector<8x32xf32>
    %153 = arith.addf %151, %152 : vector<8x32xf32>
    %154 = math.tanh %153 : vector<8x32xf32>
    %155 = arith.mulf %150, %154 : vector<8x32xf32>
    %c0_45 = arith.constant 0 : index
    %c0_46 = arith.constant 0 : index
    %156 = vector.load %arg4[%c0_45, %c0_46] : memref<8x64xf32, #tpu.memory_space<vmem>>, vector<8x32xf32>
    tpu.vector_store %arg4[%c0_45, %c0_46], %134 {strides = array<i32>} : memref<8x64xf32, #tpu.memory_space<vmem>>, vector<8x32xf32>,
    %c0_47 = arith.constant 0 : index
    %c32_48 = arith.constant 32 : index
    %157 = vector.load %arg4[%c0_47, %c32_48] : memref<8x64xf32, #tpu.memory_space<vmem>>, vector<8x32xf32>
    tpu.vector_store %arg4[%c0_47, %c32_48], %155 {strides = array<i32>} : memref<8x64xf32, #tpu.memory_space<vmem>>, vector<8x32xf32>,
    %c0_49 = arith.constant 0 : index
    %c0_50 = arith.constant 0 : index
    %158 = vector.load %arg4[%c0_49, %c0_50] : memref<8x64xf32, #tpu.memory_space<vmem>>, vector<8x64xf32>
    %159 = arith.truncf %158 : vector<8x64xf32> to vector<8x64xbf16>
    %cst_51 = arith.constant dense<0.000000e+00> : vector<8x256xf32>
    %160 = tpu.matmul %159, %3, %cst_51 {dimension_numbers = #tpu.dot_dimension_numbers<[1], [0], [0], [1], [0, 0, 1, 1], [], []>} : vector<8x64xbf16>, vector<64x256xbf16>, vector<8x256xf32> -> vector<8x256xf32>
    %161 = vector.extract_strided_slice %9 {offsets = [24, 0], sizes = [8, 128], strides = [1, 1]} : vector<64x128xf32> to vector<8x128xf32>
    %162 = vector.extract_strided_slice %160 {offsets = [0, 0], sizes = [8, 128], strides = [1, 1]} : vector<8x256xf32> to vector<8x128xf32>
    %163 = arith.addf %161, %162 : vector<8x128xf32>
    %164 = vector.broadcast %5 : vector<1x128xf32> to vector<8x128xf32>
    %165 = arith.addf %163, %164 : vector<8x128xf32>
    %166 = math.tanh %165 : vector<8x128xf32>
    %cst_52 = arith.constant 5.000000e-01 : f32
    %167 = vector.broadcast %cst_52 : f32 to vector<8x128xf32>
    %168 = arith.mulf %167, %166 : vector<8x128xf32>
    %cst_53 = arith.constant 5.000000e-01 : f32
    %169 = vector.broadcast %cst_53 : f32 to vector<8x128xf32>
    %170 = arith.addf %168, %169 : vector<8x128xf32>
    %171 = arith.select %15, %166, %170 : vector<8x128xi1>, vector<8x128xf32>
    %172 = vector.extract_strided_slice %171 {offsets = [0, 0], sizes = [8, 32], strides = [1, 1]} : vector<8x128xf32> to vector<8x32xf32>
    %173 = vector.extract_strided_slice %171 {offsets = [0, 32], sizes = [8, 32], strides = [1, 1]} : vector<8x128xf32> to vector<8x32xf32>
    %174 = vector.extract_strided_slice %171 {offsets = [0, 64], sizes = [8, 32], strides = [1, 1]} : vector<8x128xf32> to vector<8x32xf32>
    %175 = vector.extract_strided_slice %171 {offsets = [0, 96], sizes = [8, 32], strides = [1, 1]} : vector<8x128xf32> to vector<8x32xf32>
    %176 = arith.mulf %173, %132 : vector<8x32xf32>
    %177 = arith.mulf %172, %174 : vector<8x32xf32>
    %178 = arith.addf %176, %177 : vector<8x32xf32>
    %179 = math.tanh %178 : vector<8x32xf32>
    %180 = arith.mulf %175, %179 : vector<8x32xf32>
    %181 = arith.truncf %180 : vector<8x32xf32> to vector<8x32xbf16>
    %cst_54 = arith.constant dense<0.000000e+00> : vector<8x128xf32>
    %182 = tpu.matmul %181, %4, %cst_54 {dimension_numbers = #tpu.dot_dimension_numbers<[1], [0], [0], [1], [0, 0, 1, 1], [], []>} : vector<8x32xbf16>, vector<32x128xbf16>, vector<8x128xf32> -> vector<8x128xf32>
    %183 = vector.extract_strided_slice %160 {offsets = [0, 128], sizes = [8, 128], strides = [1, 1]} : vector<8x256xf32> to vector<8x128xf32>
    %184 = arith.addf %182, %183 : vector<8x128xf32>
    %185 = vector.broadcast %6 : vector<1x128xf32> to vector<8x128xf32>
    %186 = arith.addf %184, %185 : vector<8x128xf32>
    %187 = math.tanh %186 : vector<8x128xf32>
    %cst_55 = arith.constant 5.000000e-01 : f32
    %188 = vector.broadcast %cst_55 : f32 to vector<8x128xf32>
    %189 = arith.mulf %188, %187 : vector<8x128xf32>
    %cst_56 = arith.constant 5.000000e-01 : f32
    %190 = vector.broadcast %cst_56 : f32 to vector<8x128xf32>
    %191 = arith.addf %189, %190 : vector<8x128xf32>
    %192 = arith.select %15, %187, %191 : vector<8x128xi1>, vector<8x128xf32>
    %193 = vector.extract_strided_slice %192 {offsets = [0, 0], sizes = [8, 32], strides = [1, 1]} : vector<8x128xf32> to vector<8x32xf32>
    %194 = vector.extract_strided_slice %192 {offsets = [0, 32], sizes = [8, 32], strides = [1, 1]} : vector<8x128xf32> to vector<8x32xf32>
    %195 = vector.extract_strided_slice %192 {offsets = [0, 64], sizes = [8, 32], strides = [1, 1]} : vector<8x128xf32> to vector<8x32xf32>
    %196 = vector.extract_strided_slice %192 {offsets = [0, 96], sizes = [8, 32], strides = [1, 1]} : vector<8x128xf32> to vector<8x32xf32>
    %197 = arith.mulf %194, %153 : vector<8x32xf32>
    %198 = arith.mulf %193, %195 : vector<8x32xf32>
    %199 = arith.addf %197, %198 : vector<8x32xf32>
    %200 = math.tanh %199 : vector<8x32xf32>
    %201 = arith.mulf %196, %200 : vector<8x32xf32>
    %c0_57 = arith.constant 0 : index
    %c0_58 = arith.constant 0 : index
    %202 = vector.load %arg4[%c0_57, %c0_58] : memref<8x64xf32, #tpu.memory_space<vmem>>, vector<8x32xf32>
    tpu.vector_store %arg4[%c0_57, %c0_58], %180 {strides = array<i32>} : memref<8x64xf32, #tpu.memory_space<vmem>>, vector<8x32xf32>,
    %c0_59 = arith.constant 0 : index
    %c32_60 = arith.constant 32 : index
    %203 = vector.load %arg4[%c0_59, %c32_60] : memref<8x64xf32, #tpu.memory_space<vmem>>, vector<8x32xf32>
    tpu.vector_store %arg4[%c0_59, %c32_60], %201 {strides = array<i32>} : memref<8x64xf32, #tpu.memory_space<vmem>>, vector<8x32xf32>,
    %c0_61 = arith.constant 0 : index
    %c0_62 = arith.constant 0 : index
    %204 = vector.load %arg4[%c0_61, %c0_62] : memref<8x64xf32, #tpu.memory_space<vmem>>, vector<8x64xf32>
    %205 = arith.truncf %204 : vector<8x64xf32> to vector<8x64xbf16>
    %cst_63 = arith.constant dense<0.000000e+00> : vector<8x256xf32>
    %206 = tpu.matmul %205, %3, %cst_63 {dimension_numbers = #tpu.dot_dimension_numbers<[1], [0], [0], [1], [0, 0, 1, 1], [], []>} : vector<8x64xbf16>, vector<64x256xbf16>, vector<8x256xf32> -> vector<8x256xf32>
    %207 = vector.extract_strided_slice %9 {offsets = [32, 0], sizes = [8, 128], strides = [1, 1]} : vector<64x128xf32> to vector<8x128xf32>
    %208 = vector.extract_strided_slice %206 {offsets = [0, 0], sizes = [8, 128], strides = [1, 1]} : vector<8x256xf32> to vector<8x128xf32>
    %209 = arith.addf %207, %208 : vector<8x128xf32>
    %210 = vector.broadcast %5 : vector<1x128xf32> to vector<8x128xf32>
    %211 = arith.addf %209, %210 : vector<8x128xf32>
    %212 = math.tanh %211 : vector<8x128xf32>
    %cst_64 = arith.constant 5.000000e-01 : f32
    %213 = vector.broadcast %cst_64 : f32 to vector<8x128xf32>
    %214 = arith.mulf %213, %212 : vector<8x128xf32>
    %cst_65 = arith.constant 5.000000e-01 : f32
    %215 = vector.broadcast %cst_65 : f32 to vector<8x128xf32>
    %216 = arith.addf %214, %215 : vector<8x128xf32>
    %217 = arith.select %15, %212, %216 : vector<8x128xi1>, vector<8x128xf32>
    %218 = vector.extract_strided_slice %217 {offsets = [0, 0], sizes = [8, 32], strides = [1, 1]} : vector<8x128xf32> to vector<8x32xf32>
    %219 = vector.extract_strided_slice %217 {offsets = [0, 32], sizes = [8, 32], strides = [1, 1]} : vector<8x128xf32> to vector<8x32xf32>
    %220 = vector.extract_strided_slice %217 {offsets = [0, 64], sizes = [8, 32], strides = [1, 1]} : vector<8x128xf32> to vector<8x32xf32>
    %221 = vector.extract_strided_slice %217 {offsets = [0, 96], sizes = [8, 32], strides = [1, 1]} : vector<8x128xf32> to vector<8x32xf32>
    %222 = arith.mulf %219, %178 : vector<8x32xf32>
    %223 = arith.mulf %218, %220 : vector<8x32xf32>
    %224 = arith.addf %222, %223 : vector<8x32xf32>
    %225 = math.tanh %224 : vector<8x32xf32>
    %226 = arith.mulf %221, %225 : vector<8x32xf32>
    %227 = arith.truncf %226 : vector<8x32xf32> to vector<8x32xbf16>
    %cst_66 = arith.constant dense<0.000000e+00> : vector<8x128xf32>
    %228 = tpu.matmul %227, %4, %cst_66 {dimension_numbers = #tpu.dot_dimension_numbers<[1], [0], [0], [1], [0, 0, 1, 1], [], []>} : vector<8x32xbf16>, vector<32x128xbf16>, vector<8x128xf32> -> vector<8x128xf32>
    %229 = vector.extract_strided_slice %206 {offsets = [0, 128], sizes = [8, 128], strides = [1, 1]} : vector<8x256xf32> to vector<8x128xf32>
    %230 = arith.addf %228, %229 : vector<8x128xf32>
    %231 = vector.broadcast %6 : vector<1x128xf32> to vector<8x128xf32>
    %232 = arith.addf %230, %231 : vector<8x128xf32>
    %233 = math.tanh %232 : vector<8x128xf32>
    %cst_67 = arith.constant 5.000000e-01 : f32
    %234 = vector.broadcast %cst_67 : f32 to vector<8x128xf32>
    %235 = arith.mulf %234, %233 : vector<8x128xf32>
    %cst_68 = arith.constant 5.000000e-01 : f32
    %236 = vector.broadcast %cst_68 : f32 to vector<8x128xf32>
    %237 = arith.addf %235, %236 : vector<8x128xf32>
    %238 = arith.select %15, %233, %237 : vector<8x128xi1>, vector<8x128xf32>
    %239 = vector.extract_strided_slice %238 {offsets = [0, 0], sizes = [8, 32], strides = [1, 1]} : vector<8x128xf32> to vector<8x32xf32>
    %240 = vector.extract_strided_slice %238 {offsets = [0, 32], sizes = [8, 32], strides = [1, 1]} : vector<8x128xf32> to vector<8x32xf32>
    %241 = vector.extract_strided_slice %238 {offsets = [0, 64], sizes = [8, 32], strides = [1, 1]} : vector<8x128xf32> to vector<8x32xf32>
    %242 = vector.extract_strided_slice %238 {offsets = [0, 96], sizes = [8, 32], strides = [1, 1]} : vector<8x128xf32> to vector<8x32xf32>
    %243 = arith.mulf %240, %199 : vector<8x32xf32>
    %244 = arith.mulf %239, %241 : vector<8x32xf32>
    %245 = arith.addf %243, %244 : vector<8x32xf32>
    %246 = math.tanh %245 : vector<8x32xf32>
    %247 = arith.mulf %242, %246 : vector<8x32xf32>
    %c0_69 = arith.constant 0 : index
    %c0_70 = arith.constant 0 : index
    %248 = vector.load %arg4[%c0_69, %c0_70] : memref<8x64xf32, #tpu.memory_space<vmem>>, vector<8x32xf32>
    tpu.vector_store %arg4[%c0_69, %c0_70], %226 {strides = array<i32>} : memref<8x64xf32, #tpu.memory_space<vmem>>, vector<8x32xf32>,
    %c0_71 = arith.constant 0 : index
    %c32_72 = arith.constant 32 : index
    %249 = vector.load %arg4[%c0_71, %c32_72] : memref<8x64xf32, #tpu.memory_space<vmem>>, vector<8x32xf32>
    tpu.vector_store %arg4[%c0_71, %c32_72], %247 {strides = array<i32>} : memref<8x64xf32, #tpu.memory_space<vmem>>, vector<8x32xf32>,
    %c0_73 = arith.constant 0 : index
    %c0_74 = arith.constant 0 : index
    %250 = vector.load %arg4[%c0_73, %c0_74] : memref<8x64xf32, #tpu.memory_space<vmem>>, vector<8x64xf32>
    %251 = arith.truncf %250 : vector<8x64xf32> to vector<8x64xbf16>
    %cst_75 = arith.constant dense<0.000000e+00> : vector<8x256xf32>
    %252 = tpu.matmul %251, %3, %cst_75 {dimension_numbers = #tpu.dot_dimension_numbers<[1], [0], [0], [1], [0, 0, 1, 1], [], []>} : vector<8x64xbf16>, vector<64x256xbf16>, vector<8x256xf32> -> vector<8x256xf32>
    %253 = vector.extract_strided_slice %9 {offsets = [40, 0], sizes = [8, 128], strides = [1, 1]} : vector<64x128xf32> to vector<8x128xf32>
    %254 = vector.extract_strided_slice %252 {offsets = [0, 0], sizes = [8, 128], strides = [1, 1]} : vector<8x256xf32> to vector<8x128xf32>
    %255 = arith.addf %253, %254 : vector<8x128xf32>
    %256 = vector.broadcast %5 : vector<1x128xf32> to vector<8x128xf32>
    %257 = arith.addf %255, %256 : vector<8x128xf32>
    %258 = math.tanh %257 : vector<8x128xf32>
    %cst_76 = arith.constant 5.000000e-01 : f32
    %259 = vector.broadcast %cst_76 : f32 to vector<8x128xf32>
    %260 = arith.mulf %259, %258 : vector<8x128xf32>
    %cst_77 = arith.constant 5.000000e-01 : f32
    %261 = vector.broadcast %cst_77 : f32 to vector<8x128xf32>
    %262 = arith.addf %260, %261 : vector<8x128xf32>
    %263 = arith.select %15, %258, %262 : vector<8x128xi1>, vector<8x128xf32>
    %264 = vector.extract_strided_slice %263 {offsets = [0, 0], sizes = [8, 32], strides = [1, 1]} : vector<8x128xf32> to vector<8x32xf32>
    %265 = vector.extract_strided_slice %263 {offsets = [0, 32], sizes = [8, 32], strides = [1, 1]} : vector<8x128xf32> to vector<8x32xf32>
    %266 = vector.extract_strided_slice %263 {offsets = [0, 64], sizes = [8, 32], strides = [1, 1]} : vector<8x128xf32> to vector<8x32xf32>
    %267 = vector.extract_strided_slice %263 {offsets = [0, 96], sizes = [8, 32], strides = [1, 1]} : vector<8x128xf32> to vector<8x32xf32>
    %268 = arith.mulf %265, %224 : vector<8x32xf32>
    %269 = arith.mulf %264, %266 : vector<8x32xf32>
    %270 = arith.addf %268, %269 : vector<8x32xf32>
    %271 = math.tanh %270 : vector<8x32xf32>
    %272 = arith.mulf %267, %271 : vector<8x32xf32>
    %273 = arith.truncf %272 : vector<8x32xf32> to vector<8x32xbf16>
    %cst_78 = arith.constant dense<0.000000e+00> : vector<8x128xf32>
    %274 = tpu.matmul %273, %4, %cst_78 {dimension_numbers = #tpu.dot_dimension_numbers<[1], [0], [0], [1], [0, 0, 1, 1], [], []>} : vector<8x32xbf16>, vector<32x128xbf16>, vector<8x128xf32> -> vector<8x128xf32>
    %275 = vector.extract_strided_slice %252 {offsets = [0, 128], sizes = [8, 128], strides = [1, 1]} : vector<8x256xf32> to vector<8x128xf32>
    %276 = arith.addf %274, %275 : vector<8x128xf32>
    %277 = vector.broadcast %6 : vector<1x128xf32> to vector<8x128xf32>
    %278 = arith.addf %276, %277 : vector<8x128xf32>
    %279 = math.tanh %278 : vector<8x128xf32>
    %cst_79 = arith.constant 5.000000e-01 : f32
    %280 = vector.broadcast %cst_79 : f32 to vector<8x128xf32>
    %281 = arith.mulf %280, %279 : vector<8x128xf32>
    %cst_80 = arith.constant 5.000000e-01 : f32
    %282 = vector.broadcast %cst_80 : f32 to vector<8x128xf32>
    %283 = arith.addf %281, %282 : vector<8x128xf32>
    %284 = arith.select %15, %279, %283 : vector<8x128xi1>, vector<8x128xf32>
    %285 = vector.extract_strided_slice %284 {offsets = [0, 0], sizes = [8, 32], strides = [1, 1]} : vector<8x128xf32> to vector<8x32xf32>
    %286 = vector.extract_strided_slice %284 {offsets = [0, 32], sizes = [8, 32], strides = [1, 1]} : vector<8x128xf32> to vector<8x32xf32>
    %287 = vector.extract_strided_slice %284 {offsets = [0, 64], sizes = [8, 32], strides = [1, 1]} : vector<8x128xf32> to vector<8x32xf32>
    %288 = vector.extract_strided_slice %284 {offsets = [0, 96], sizes = [8, 32], strides = [1, 1]} : vector<8x128xf32> to vector<8x32xf32>
    %289 = arith.mulf %286, %245 : vector<8x32xf32>
    %290 = arith.mulf %285, %287 : vector<8x32xf32>
    %291 = arith.addf %289, %290 : vector<8x32xf32>
    %292 = math.tanh %291 : vector<8x32xf32>
    %293 = arith.mulf %288, %292 : vector<8x32xf32>
    %c0_81 = arith.constant 0 : index
    %c0_82 = arith.constant 0 : index
    %294 = vector.load %arg4[%c0_81, %c0_82] : memref<8x64xf32, #tpu.memory_space<vmem>>, vector<8x32xf32>
    tpu.vector_store %arg4[%c0_81, %c0_82], %272 {strides = array<i32>} : memref<8x64xf32, #tpu.memory_space<vmem>>, vector<8x32xf32>,
    %c0_83 = arith.constant 0 : index
    %c32_84 = arith.constant 32 : index
    %295 = vector.load %arg4[%c0_83, %c32_84] : memref<8x64xf32, #tpu.memory_space<vmem>>, vector<8x32xf32>
    tpu.vector_store %arg4[%c0_83, %c32_84], %293 {strides = array<i32>} : memref<8x64xf32, #tpu.memory_space<vmem>>, vector<8x32xf32>,
    %c0_85 = arith.constant 0 : index
    %c0_86 = arith.constant 0 : index
    %296 = vector.load %arg4[%c0_85, %c0_86] : memref<8x64xf32, #tpu.memory_space<vmem>>, vector<8x64xf32>
    %297 = arith.truncf %296 : vector<8x64xf32> to vector<8x64xbf16>
    %cst_87 = arith.constant dense<0.000000e+00> : vector<8x256xf32>
    %298 = tpu.matmul %297, %3, %cst_87 {dimension_numbers = #tpu.dot_dimension_numbers<[1], [0], [0], [1], [0, 0, 1, 1], [], []>} : vector<8x64xbf16>, vector<64x256xbf16>, vector<8x256xf32> -> vector<8x256xf32>
    %299 = vector.extract_strided_slice %9 {offsets = [48, 0], sizes = [8, 128], strides = [1, 1]} : vector<64x128xf32> to vector<8x128xf32>
    %300 = vector.extract_strided_slice %298 {offsets = [0, 0], sizes = [8, 128], strides = [1, 1]} : vector<8x256xf32> to vector<8x128xf32>
    %301 = arith.addf %299, %300 : vector<8x128xf32>
    %302 = vector.broadcast %5 : vector<1x128xf32> to vector<8x128xf32>
    %303 = arith.addf %301, %302 : vector<8x128xf32>
    %304 = math.tanh %303 : vector<8x128xf32>
    %cst_88 = arith.constant 5.000000e-01 : f32
    %305 = vector.broadcast %cst_88 : f32 to vector<8x128xf32>
    %306 = arith.mulf %305, %304 : vector<8x128xf32>
    %cst_89 = arith.constant 5.000000e-01 : f32
    %307 = vector.broadcast %cst_89 : f32 to vector<8x128xf32>
    %308 = arith.addf %306, %307 : vector<8x128xf32>
    %309 = arith.select %15, %304, %308 : vector<8x128xi1>, vector<8x128xf32>
    %310 = vector.extract_strided_slice %309 {offsets = [0, 0], sizes = [8, 32], strides = [1, 1]} : vector<8x128xf32> to vector<8x32xf32>
    %311 = vector.extract_strided_slice %309 {offsets = [0, 32], sizes = [8, 32], strides = [1, 1]} : vector<8x128xf32> to vector<8x32xf32>
    %312 = vector.extract_strided_slice %309 {offsets = [0, 64], sizes = [8, 32], strides = [1, 1]} : vector<8x128xf32> to vector<8x32xf32>
    %313 = vector.extract_strided_slice %309 {offsets = [0, 96], sizes = [8, 32], strides = [1, 1]} : vector<8x128xf32> to vector<8x32xf32>
    %314 = arith.mulf %311, %270 : vector<8x32xf32>
    %315 = arith.mulf %310, %312 : vector<8x32xf32>
    %316 = arith.addf %314, %315 : vector<8x32xf32>
    %317 = math.tanh %316 : vector<8x32xf32>
    %318 = arith.mulf %313, %317 : vector<8x32xf32>
    %319 = arith.truncf %318 : vector<8x32xf32> to vector<8x32xbf16>
    %cst_90 = arith.constant dense<0.000000e+00> : vector<8x128xf32>
    %320 = tpu.matmul %319, %4, %cst_90 {dimension_numbers = #tpu.dot_dimension_numbers<[1], [0], [0], [1], [0, 0, 1, 1], [], []>} : vector<8x32xbf16>, vector<32x128xbf16>, vector<8x128xf32> -> vector<8x128xf32>
    %321 = vector.extract_strided_slice %298 {offsets = [0, 128], sizes = [8, 128], strides = [1, 1]} : vector<8x256xf32> to vector<8x128xf32>
    %322 = arith.addf %320, %321 : vector<8x128xf32>
    %323 = vector.broadcast %6 : vector<1x128xf32> to vector<8x128xf32>
    %324 = arith.addf %322, %323 : vector<8x128xf32>
    %325 = math.tanh %324 : vector<8x128xf32>
    %cst_91 = arith.constant 5.000000e-01 : f32
    %326 = vector.broadcast %cst_91 : f32 to vector<8x128xf32>
    %327 = arith.mulf %326, %325 : vector<8x128xf32>
    %cst_92 = arith.constant 5.000000e-01 : f32
    %328 = vector.broadcast %cst_92 : f32 to vector<8x128xf32>
    %329 = arith.addf %327, %328 : vector<8x128xf32>
    %330 = arith.select %15, %325, %329 : vector<8x128xi1>, vector<8x128xf32>
    %331 = vector.extract_strided_slice %330 {offsets = [0, 0], sizes = [8, 32], strides = [1, 1]} : vector<8x128xf32> to vector<8x32xf32>
    %332 = vector.extract_strided_slice %330 {offsets = [0, 32], sizes = [8, 32], strides = [1, 1]} : vector<8x128xf32> to vector<8x32xf32>
    %333 = vector.extract_strided_slice %330 {offsets = [0, 64], sizes = [8, 32], strides = [1, 1]} : vector<8x128xf32> to vector<8x32xf32>
    %334 = vector.extract_strided_slice %330 {offsets = [0, 96], sizes = [8, 32], strides = [1, 1]} : vector<8x128xf32> to vector<8x32xf32>
    %335 = arith.mulf %332, %291 : vector<8x32xf32>
    %336 = arith.mulf %331, %333 : vector<8x32xf32>
    %337 = arith.addf %335, %336 : vector<8x32xf32>
    %338 = math.tanh %337 : vector<8x32xf32>
    %339 = arith.mulf %334, %338 : vector<8x32xf32>
    %c0_93 = arith.constant 0 : index
    %c0_94 = arith.constant 0 : index
    %340 = vector.load %arg4[%c0_93, %c0_94] : memref<8x64xf32, #tpu.memory_space<vmem>>, vector<8x32xf32>
    tpu.vector_store %arg4[%c0_93, %c0_94], %318 {strides = array<i32>} : memref<8x64xf32, #tpu.memory_space<vmem>>, vector<8x32xf32>,
    %c0_95 = arith.constant 0 : index
    %c32_96 = arith.constant 32 : index
    %341 = vector.load %arg4[%c0_95, %c32_96] : memref<8x64xf32, #tpu.memory_space<vmem>>, vector<8x32xf32>
    tpu.vector_store %arg4[%c0_95, %c32_96], %339 {strides = array<i32>} : memref<8x64xf32, #tpu.memory_space<vmem>>, vector<8x32xf32>,
    %c0_97 = arith.constant 0 : index
    %c0_98 = arith.constant 0 : index
    %342 = vector.load %arg4[%c0_97, %c0_98] : memref<8x64xf32, #tpu.memory_space<vmem>>, vector<8x64xf32>
    %343 = arith.truncf %342 : vector<8x64xf32> to vector<8x64xbf16>
    %cst_99 = arith.constant dense<0.000000e+00> : vector<8x256xf32>
    %344 = tpu.matmul %343, %3, %cst_99 {dimension_numbers = #tpu.dot_dimension_numbers<[1], [0], [0], [1], [0, 0, 1, 1], [], []>} : vector<8x64xbf16>, vector<64x256xbf16>, vector<8x256xf32> -> vector<8x256xf32>
    %345 = vector.extract_strided_slice %9 {offsets = [56, 0], sizes = [8, 128], strides = [1, 1]} : vector<64x128xf32> to vector<8x128xf32>
    %346 = vector.extract_strided_slice %344 {offsets = [0, 0], sizes = [8, 128], strides = [1, 1]} : vector<8x256xf32> to vector<8x128xf32>
    %347 = arith.addf %345, %346 : vector<8x128xf32>
    %348 = vector.broadcast %5 : vector<1x128xf32> to vector<8x128xf32>
    %349 = arith.addf %347, %348 : vector<8x128xf32>
    %350 = math.tanh %349 : vector<8x128xf32>
    %cst_100 = arith.constant 5.000000e-01 : f32
    %351 = vector.broadcast %cst_100 : f32 to vector<8x128xf32>
    %352 = arith.mulf %351, %350 : vector<8x128xf32>
    %cst_101 = arith.constant 5.000000e-01 : f32
    %353 = vector.broadcast %cst_101 : f32 to vector<8x128xf32>
    %354 = arith.addf %352, %353 : vector<8x128xf32>
    %355 = arith.select %15, %350, %354 : vector<8x128xi1>, vector<8x128xf32>
    %356 = vector.extract_strided_slice %355 {offsets = [0, 0], sizes = [8, 32], strides = [1, 1]} : vector<8x128xf32> to vector<8x32xf32>
    %357 = vector.extract_strided_slice %355 {offsets = [0, 32], sizes = [8, 32], strides = [1, 1]} : vector<8x128xf32> to vector<8x32xf32>
    %358 = vector.extract_strided_slice %355 {offsets = [0, 64], sizes = [8, 32], strides = [1, 1]} : vector<8x128xf32> to vector<8x32xf32>
    %359 = vector.extract_strided_slice %355 {offsets = [0, 96], sizes = [8, 32], strides = [1, 1]} : vector<8x128xf32> to vector<8x32xf32>
    %360 = arith.mulf %357, %316 : vector<8x32xf32>
    %361 = arith.mulf %356, %358 : vector<8x32xf32>
    %362 = arith.addf %360, %361 : vector<8x32xf32>
    %363 = math.tanh %362 : vector<8x32xf32>
    %364 = arith.mulf %359, %363 : vector<8x32xf32>
    %365 = arith.truncf %364 : vector<8x32xf32> to vector<8x32xbf16>
    %cst_102 = arith.constant dense<0.000000e+00> : vector<8x128xf32>
    %366 = tpu.matmul %365, %4, %cst_102 {dimension_numbers = #tpu.dot_dimension_numbers<[1], [0], [0], [1], [0, 0, 1, 1], [], []>} : vector<8x32xbf16>, vector<32x128xbf16>, vector<8x128xf32> -> vector<8x128xf32>
    %367 = vector.extract_strided_slice %344 {offsets = [0, 128], sizes = [8, 128], strides = [1, 1]} : vector<8x256xf32> to vector<8x128xf32>
    %368 = arith.addf %366, %367 : vector<8x128xf32>
    %369 = vector.broadcast %6 : vector<1x128xf32> to vector<8x128xf32>
    %370 = arith.addf %368, %369 : vector<8x128xf32>
    %371 = math.tanh %370 : vector<8x128xf32>
    %cst_103 = arith.constant 5.000000e-01 : f32
    %372 = vector.broadcast %cst_103 : f32 to vector<8x128xf32>
    %373 = arith.mulf %372, %371 : vector<8x128xf32>
    %cst_104 = arith.constant 5.000000e-01 : f32
    %374 = vector.broadcast %cst_104 : f32 to vector<8x128xf32>
    %375 = arith.addf %373, %374 : vector<8x128xf32>
    %376 = arith.select %15, %371, %375 : vector<8x128xi1>, vector<8x128xf32>
    %377 = vector.extract_strided_slice %376 {offsets = [0, 0], sizes = [8, 32], strides = [1, 1]} : vector<8x128xf32> to vector<8x32xf32>
    %378 = vector.extract_strided_slice %376 {offsets = [0, 32], sizes = [8, 32], strides = [1, 1]} : vector<8x128xf32> to vector<8x32xf32>
    %379 = vector.extract_strided_slice %376 {offsets = [0, 64], sizes = [8, 32], strides = [1, 1]} : vector<8x128xf32> to vector<8x32xf32>
    %380 = vector.extract_strided_slice %376 {offsets = [0, 96], sizes = [8, 32], strides = [1, 1]} : vector<8x128xf32> to vector<8x32xf32>
    %381 = arith.mulf %378, %337 : vector<8x32xf32>
    %382 = arith.mulf %377, %379 : vector<8x32xf32>
    %383 = arith.addf %381, %382 : vector<8x32xf32>
    %384 = math.tanh %383 : vector<8x32xf32>
    %385 = arith.mulf %380, %384 : vector<8x32xf32>
    %c0_105 = arith.constant 0 : index
    %c0_106 = arith.constant 0 : index
    %386 = vector.load %arg4[%c0_105, %c0_106] : memref<8x64xf32, #tpu.memory_space<vmem>>, vector<8x32xf32>
    tpu.vector_store %arg4[%c0_105, %c0_106], %364 {strides = array<i32>} : memref<8x64xf32, #tpu.memory_space<vmem>>, vector<8x32xf32>,
    %c0_107 = arith.constant 0 : index
    %c32_108 = arith.constant 32 : index
    %387 = vector.load %arg4[%c0_107, %c32_108] : memref<8x64xf32, #tpu.memory_space<vmem>>, vector<8x32xf32>
    tpu.vector_store %arg4[%c0_107, %c32_108], %385 {strides = array<i32>} : memref<8x64xf32, #tpu.memory_space<vmem>>, vector<8x32xf32>,
    %388 = arith.truncf %385 : vector<8x32xf32> to vector<8x32xbf16>
    %c176 = arith.constant 176 : index
    %c0_109 = arith.constant 0 : index
    %389 = vector.load %arg1[%c176, %c0_109] : memref<240x128xbf16, #tpu.memory_space<vmem>>, vector<32x128xbf16>
    %c208 = arith.constant 208 : index
    %c0_110 = arith.constant 0 : index
    %390 = vector.load %arg1[%c208, %c0_110] : memref<240x128xbf16, #tpu.memory_space<vmem>>, vector<32x128xbf16>
    %c2 = arith.constant 2 : index
    %c0_111 = arith.constant 0 : index
    %391 = vector.load %arg2[%c2, %c0_111] : memref<8x128xf32, #tpu.memory_space<vmem>>, vector<1x128xf32>
    %c3 = arith.constant 3 : index
    %c0_112 = arith.constant 0 : index
    %392 = vector.load %arg2[%c3, %c0_112] : memref<8x128xf32, #tpu.memory_space<vmem>>, vector<1x128xf32>
    %c4 = arith.constant 4 : index
    %c0_113 = arith.constant 0 : index
    %393 = vector.load %arg2[%c4, %c0_113] : memref<8x128xf32, #tpu.memory_space<vmem>>, vector<1x128xf32>
    %c5 = arith.constant 5 : index
    %c0_114 = arith.constant 0 : index
    %394 = vector.load %arg2[%c5, %c0_114] : memref<8x128xf32, #tpu.memory_space<vmem>>, vector<1x128xf32>
    %c6 = arith.constant 6 : index
    %c0_115 = arith.constant 0 : index
    %395 = vector.load %arg2[%c6, %c0_115] : memref<8x128xf32, #tpu.memory_space<vmem>>, vector<1x128xf32>
    %c7 = arith.constant 7 : index
    %c0_116 = arith.constant 0 : index
    %396 = vector.load %arg2[%c7, %c0_116] : memref<8x128xf32, #tpu.memory_space<vmem>>, vector<1x1xf32>
    %cst_117 = arith.constant dense<0.000000e+00> : vector<8x128xf32>
    %397 = tpu.matmul %388, %389, %cst_117 {dimension_numbers = #tpu.dot_dimension_numbers<[1], [0], [0], [1], [0, 0, 1, 1], [], []>} : vector<8x32xbf16>, vector<32x128xbf16>, vector<8x128xf32> -> vector<8x128xf32>
    %398 = vector.broadcast %391 : vector<1x128xf32> to vector<8x128xf32>
    %399 = arith.addf %397, %398 : vector<8x128xf32>
    %400 = arith.truncf %399 : vector<8x128xf32> to vector<8x128xbf16>
    %401 = arith.truncf %393 : vector<1x128xf32> to vector<1x128xbf16>
    %cst_118 = arith.constant dense<0.000000e+00> : vector<1x8xf32>
    %402 = tpu.matmul %401, %400, %cst_118 {dimension_numbers = #tpu.dot_dimension_numbers<[1], [1], [0], [0], [0, 0, 1, 0], [], []>} : vector<1x128xbf16>, vector<8x128xbf16>, vector<1x8xf32> -> vector<1x8xf32>
    %403 = vector.broadcast %394 : vector<1x128xf32> to vector<8x128xf32>
    %404 = arith.mulf %399, %403 : vector<8x128xf32>
    %cst_119 = arith.constant dense<0.000000e+00> : vector<8xf32>
    %405 = vector.multi_reduction <add>, %404, %cst_119 [1] : vector<8x128xf32> to vector<8xf32>
    %406 = vector.shape_cast %405 : vector<8xf32> to vector<8x1xf32>
    %407 = vector.broadcast %406 : vector<8x1xf32> to vector<8x8xf32>
    %408 = vector.broadcast %402 : vector<1x8xf32> to vector<8x8xf32>
    %409 = arith.addf %407, %408 : vector<8x8xf32>
    %cst_120 = arith.constant 0.000000e+00 : f32
    %410 = vector.broadcast %cst_120 : f32 to vector<8x8xf32>
    %411 = arith.cmpf oge, %409, %410 : vector<8x8xf32>
    %cst_121 = arith.constant 0.00999999977 : f32
    %412 = vector.broadcast %cst_121 : f32 to vector<8x8xf32>
    %413 = arith.mulf %412, %409 : vector<8x8xf32>
    %414 = arith.select %411, %409, %413 : vector<8x8xi1>, vector<8x8xf32>
    %cst_122 = arith.constant dense<0xFF800000> : vector<8xf32>
    %415 = vector.multi_reduction <maximumf>, %414, %cst_122 [1] : vector<8x8xf32> to vector<8xf32>
    %416 = vector.shape_cast %415 : vector<8xf32> to vector<8x1xf32>
    %417 = vector.broadcast %416 : vector<8x1xf32> to vector<8x8xf32>
    %418 = arith.subf %414, %417 : vector<8x8xf32>
    %419 = math.exp %418 : vector<8x8xf32>
    %cst_123 = arith.constant dense<0.000000e+00> : vector<8xf32>
    %420 = vector.multi_reduction <add>, %419, %cst_123 [1] : vector<8x8xf32> to vector<8xf32>
    %421 = vector.shape_cast %420 : vector<8xf32> to vector<8x1xf32>
    %422 = tpu.reciprocal %421 {approx = true} : vector<8x1xf32> -> vector<8x1xf32>
    %423 = vector.broadcast %422 : vector<8x1xf32> to vector<8x8xf32>
    %424 = arith.mulf %419, %423 : vector<8x8xf32>
    %425 = arith.truncf %424 : vector<8x8xf32> to vector<8x8xbf16>
    %cst_124 = arith.constant dense<0.000000e+00> : vector<8x32xf32>
    %426 = tpu.matmul %425, %388, %cst_124 {dimension_numbers = #tpu.dot_dimension_numbers<[1], [0], [0], [1], [0, 0, 1, 1], [], []>} : vector<8x8xbf16>, vector<8x32xbf16>, vector<8x32xf32> -> vector<8x32xf32>
    %427 = arith.addf %426, %385 : vector<8x32xf32>
    %428 = arith.truncf %427 : vector<8x32xf32> to vector<8x32xbf16>
    %cst_125 = arith.constant dense<0.000000e+00> : vector<8x128xf32>
    %429 = tpu.matmul %428, %390, %cst_125 {dimension_numbers = #tpu.dot_dimension_numbers<[1], [0], [0], [1], [0, 0, 1, 1], [], []>} : vector<8x32xbf16>, vector<32x128xbf16>, vector<8x128xf32> -> vector<8x128xf32>
    %430 = vector.broadcast %392 : vector<1x128xf32> to vector<8x128xf32>
    %431 = arith.addf %429, %430 : vector<8x128xf32>
    %cst_126 = arith.constant 0.000000e+00 : f32
    %432 = vector.broadcast %cst_126 : f32 to vector<8x128xf32>
    %433 = arith.cmpf oge, %431, %432 : vector<8x128xf32>
    %cst_127 = arith.constant 0.00999999977 : f32
    %434 = vector.broadcast %cst_127 : f32 to vector<8x128xf32>
    %435 = arith.mulf %434, %431 : vector<8x128xf32>
    %436 = arith.select %433, %431, %435 : vector<8x128xi1>, vector<8x128xf32>
    %437 = arith.truncf %395 : vector<1x128xf32> to vector<1x128xbf16>
    %438 = arith.truncf %436 : vector<8x128xf32> to vector<8x128xbf16>
    %cst_128 = arith.constant dense<0.000000e+00> : vector<1x8xf32>
    %439 = tpu.matmul %437, %438, %cst_128 {dimension_numbers = #tpu.dot_dimension_numbers<[1], [1], [0], [0], [0, 0, 1, 0], [], []>} : vector<1x128xbf16>, vector<8x128xbf16>, vector<1x8xf32> -> vector<1x8xf32>
    %440 = vector.broadcast %396 : vector<1x1xf32> to vector<1x8xf32>
    %441 = arith.addf %439, %440 : vector<1x8xf32>
    %c0_129 = arith.constant 0 : index
    %c0_130 = arith.constant 0 : index
    %442 = vector.load %arg3[%c0_129, %c0_130] : memref<1x8xf32, #tpu.memory_space<vmem>>, vector<1x8xf32>
    tpu.vector_store %arg3[%c0_129, %c0_130], %441 {strides = array<i32>} : memref<1x8xf32, #tpu.memory_space<vmem>>, vector<1x8xf32>,
    return
  }
}

</mosaic_0001>

<llo_original>
// kernel: gat_model_forward.1
$region0: #{gat_model_forward.1}
  #allocation0 [shape = 'u32[]', space=smem, size = 0x4, offset = 0x4, fixed_abs, tag = 'smem constant byte address 0x4 - core index']
  #allocation1 [shape = 'u32[144,128]{1,0:T(1,128)}', space=vmem, size = 0x12000, scoped, tag = 'internal scratch']
  #allocation2 [shape = 'f32[8,64]{1,0:T(8,128)}', space=vmem, size = 0x1000, scoped, tag = 'scratch operand']
  %s0 = inlined_call_operand.vmem [shape: f32[64,16], index: 0, kind: input, shape index: {}]
  %s1 = inlined_call_operand.vmem [shape: bf16[240,128], index: 1, kind: input, shape index: {}]
  %s2 = inlined_call_operand.vmem [shape: f32[8,128], index: 2, kind: input, shape index: {}]
  %s3 = inlined_call_operand.hbm [shape: f32[1,8], index: 3, kind: output, shape index: {}]
  %s4 = sld [smem:[#allocation0]]
  $region22: #{gat_model_forward.1} parent=0
    _
  %s6 = ssub.s32 1, %s4
  %s7 = scalar_select 0, %s6, %s4
  $region1: #{gat_model_forward.1} parent=0
    #allocation3 [shape = 'u8[512]{0}', space=vmem, size = 0x400, scoped, tag = 'output window, operand 0, single buffered']
    #allocation4 [shape = 's32[1]{0}', space=sflag, size = 0x4, scoped, tag = 'scoped memory for gat_model_forward.1']
    %8 = vsyncpa [#allocation4], 0
    // Predicated region
    $region2: #{gat_model_forward.1} parent=1 // pred_check
      _
    $region3: #{gat_model_forward.1} parent=1 // pred_check_branch
      %10 = sbr.rel (0) target = $region5
    $region4: #{gat_model_forward.1} parent=1 // pred_region
      _
    $region5: #{gat_model_forward.1} parent=1 // pred_fallthru
      _
    // Predicated region
    $region6: #{gat_model_forward.1} parent=1 // pred_check
      _
    $region7: #{gat_model_forward.1} parent=1 // pred_check_branch
      %12 = sbr.rel (0) target = $region9
    $region8: #{gat_model_forward.1} parent=1 // pred_region
      _
    $region9: #{gat_model_forward.1} parent=1 // pred_fallthru
      _
    // Predicated region
    $region10: #{gat_model_forward.1} parent=1 // pred_check
      _
    $region11: #{gat_model_forward.1} parent=1 // pred_check_branch
      %14 = sbr.rel (0) target = $region13
    $region12: #{gat_model_forward.1} parent=1 // pred_region
      _
    $region13: #{gat_model_forward.1} parent=1 // pred_fallthru
      _
    %v16 = vld [vmem:[%s1] sm:$0xf]
    %v17 = vld [vmem:[%s1 + $0x4] sm:$0xf]
    %v18 = vld [vmem:[%s1 + $0x8] sm:$0xf]
    %v19 = vld [vmem:[%s1 + $0xc] sm:$0xf]
    %v20 = vld [vmem:[%s1 + $0x10] sm:$0xf]
    %v21 = vld [vmem:[%s1 + $0x14] sm:$0xf]
    %v22 = vld [vmem:[%s1 + $0x18] sm:$0xf]
    %v23 = vld [vmem:[%s1 + $0x1c] sm:$0xf]
    %v24 = vld [vmem:[%s1 + $0x20] sm:$0xf]
    %v25 = vld [vmem:[%s1 + $0x24] sm:$0xf]
    %v26 = vld [vmem:[%s1 + $0x28] sm:$0xf]
    %v27 = vld [vmem:[%s1 + $0x2c] sm:$0xf]
    %v28 = vld [vmem:[%s1 + $0x30] sm:$0xf]
    %v29 = vld [vmem:[%s1 + $0x34] sm:$0xf]
    %v30 = vld [vmem:[%s1 + $0x38] sm:$0xf]
    %v31 = vld [vmem:[%s1 + $0x3c] sm:$0xf]
    %v32 = vld [vmem:[%s1 + $0x40] sm:$0xf]
    %v33 = vld [vmem:[%s1 + $0x44] sm:$0xf]
    %v42 = vunpack.c.l.b16 %v18
    %v43 = vunpack.c.l.b16 %v19
    %v44 = vunpack.c.l.b16 %v20
    %v45 = vunpack.c.l.b16 %v21
    %v46 = vunpack.c.l.b16 %v22
    %v47 = vunpack.c.l.b16 %v23
    %v48 = vunpack.c.l.b16 %v24
    %v49 = vunpack.c.l.b16 %v25
    %v50 = vpack.c.b16 %v43, %v42
    %v51 = vpack.c.b16 %v45, %v44
    %v52 = vpack.c.b16 %v47, %v46
    %v53 = vpack.c.b16 %v49, %v48
    %v66 = vunpack.c.l.b16 %v26
    %v67 = vunpack.c.l.b16 %v27
    %v68 = vunpack.c.l.b16 %v28
    %v69 = vunpack.c.l.b16 %v29
    %v70 = vunpack.c.l.b16 %v30
    %v71 = vunpack.c.l.b16 %v31
    %v72 = vunpack.c.l.b16 %v32
    %v73 = vunpack.c.l.b16 %v33
    %v74 = vpack.c.b16 %v67, %v66
    %v75 = vpack.c.b16 %v69, %v68
    %v76 = vpack.c.b16 %v71, %v70
    %v77 = vpack.c.b16 %v73, %v72
    %v82 = vld [vmem:[%s1 + $0x48] sm:$0xf]
    %v83 = vld [vmem:[%s1 + $0x4c] sm:$0xf]
    %v84 = vld [vmem:[%s1 + $0x50] sm:$0xf]
    %v85 = vld [vmem:[%s1 + $0x54] sm:$0xf]
    %v86 = vld [vmem:[%s2] sm:$0x1]
    %v87 = vld [vmem:[%s2 + $0x1] sm:$0x1]
    %v88 = vld [vmem:[%s0] sm:$0xff]
    %v89 = vld [vmem:[%s0 + $0x8] sm:$0xff]
    %v90 = vld [vmem:[%s0 + $0x10] sm:$0xff]
    %v91 = vld [vmem:[%s0 + $0x18] sm:$0xff]
    %v92 = vld [vmem:[%s0 + $0x20] sm:$0xff]
    %v93 = vld [vmem:[%s0 + $0x28] sm:$0xff]
    %v94 = vld [vmem:[%s0 + $0x30] sm:$0xff]
    %v95 = vld [vmem:[%s0 + $0x38] sm:$0xff]
    %v96 = vpack.c.bf16 %v89, %v88
    %v97 = vpack.c.bf16 %v91, %v90
    %v98 = vpack.c.bf16 %v93, %v92
    %v99 = vpack.c.bf16 %v95, %v94
    %v102 = vunpack.c.l.b16 %v16
    %v103 = vunpack.c.l.b16 %v17
    %v104 = vpack.c.b16 %v103, %v102
    %vm106 = vcmask 130048
    %v108 = vsel %vm106, %v96, 0
    %v111 = vsel %vm106, %v97, 0
    %v114 = vsel %vm106, %v98, 0
    %v117 = vsel %vm106, %v99, 0
    %119 = vmatprep.subr.bf16.mxu0 0
    %120 = vmatpush1.bf16.msra.mxu0 0
    %121 = vmatprep.subr.bf16.mxu0 0
    %122 = vmatpush1.bf16.msra.mxu0 0
    %123 = vmatprep.subr.bf16.mxu0 0
    %124 = vmatpush1.bf16.msra.mxu0 0
    %125 = vmatprep.subr.bf16.mxu0 0
    %126 = vmatpush1.bf16.msra.mxu0 0
    %127 = vmatprep.subr.bf16.mxu0 0
    %128 = vmatpush1.bf16.msra.mxu0 0
    %129 = vmatprep.subr.bf16.mxu0 0
    %130 = vmatpush1.bf16.msra.mxu0 0
    %131 = vmatprep.subr.bf16.mxu0 0
    %132 = vmatpush1.bf16.msra.mxu0 0
    %133 = vmatprep.subr.bf16.mxu0 0
    %134 = vmatpush1.bf16.msra.mxu0 %v104
    %135 = vmatprep.subr.bf16.mxu0 0
    %136 = vmatpush2.bf16.msra.mxu0 0
    %137 = vmatprep.subr.bf16.mxu0 0
    %138 = vmatpush2.bf16.msra.mxu0 0
    %139 = vmatprep.subr.bf16.mxu0 0
    %140 = vmatpush2.bf16.msra.mxu0 0
    %141 = vmatprep.subr.bf16.mxu0 0
    %142 = vmatpush2.bf16.msra.mxu0 0
    %143 = vmatprep.subr.bf16.mxu0 0
    %144 = vmatpush2.bf16.msra.mxu0 0
    %145 = vmatprep.subr.bf16.mxu0 0
    %146 = vmatpush2.bf16.msra.mxu0 0
    %147 = vmatprep.subr.bf16.mxu0 0
    %148 = vmatpush2.bf16.msra.mxu0 0
    %149 = vmatprep.subr.bf16.mxu0 0
    %150 = vmatpush2.bf16.msra.mxu0 0
    %151 = vmatprep.mubr.bf16.mxu0 0
    %152 = vmatmul.mubr.bf16.gmra.mxu0 %v108
    %v153 = vpop.f32.mrf.mxu0
    %v154 = vadd.f32 0.0, %v153
    %v155 = vpop.f32.mrf.mxu0
    %v156 = vpop.f32.mrf.mxu0
    %v157 = vadd.f32 0.0, %v156
    %v158 = vpop.f32.mrf.mxu0
    %159 = vmatprep.mubr.bf16.mxu0 0
    %160 = vmatmul.mubr.bf16.gmra.mxu0 %v111
    %v161 = vpop.f32.mrf.mxu0
    %v162 = vadd.f32 0.0, %v161
    %v163 = vpop.f32.mrf.mxu0
    %v164 = vpop.f32.mrf.mxu0
    %v165 = vadd.f32 0.0, %v164
    %v166 = vpop.f32.mrf.mxu0
    %167 = vmatprep.mubr.bf16.mxu0 0
    %168 = vmatmul.mubr.bf16.gmra.mxu0 %v114
    %v169 = vpop.f32.mrf.mxu0
    %v170 = vadd.f32 0.0, %v169
    %v171 = vpop.f32.mrf.mxu0
    %v172 = vpop.f32.mrf.mxu0
    %v173 = vadd.f32 0.0, %v172
    %v174 = vpop.f32.mrf.mxu0
    %175 = vmatprep.mubr.bf16.mxu0 0
    %176 = vmatmul.mubr.bf16.gmra.mxu0 %v117
    %v177 = vpop.f32.mrf.mxu0
    %v178 = vadd.f32 0.0, %v177
    %v179 = vpop.f32.mrf.mxu0
    %v180 = vpop.f32.mrf.mxu0
    %v181 = vadd.f32 0.0, %v180
    %v182 = vpop.f32.mrf.mxu0
    %183 = vdwg.mxu0
    %v184 = vlaneseq
    %v185 = vand.u32 %v184, 127
    %vm186 = vcmp.ge.s32.totalorder %v185, 64
    %vm187 = vcmp.lt.s32.totalorder %v185, 96
    %vm188 = vmand %vm186, %vm187
    %vm189 = vcmask 523264
    %190 = vst.msk [vmem:[#allocation2] sm:$0xff] %vm189, 0.0
    %v191 = vld [vmem:[#allocation2] sm:$0xff]
    %v192 = vpack.c.bf16 %v191, %v191
    %v194 = vsel %vm189, %v192, 0
    %196 = vmatprep.subr.bf16.mxu0 0
    %197 = vmatpush1.bf16.msra.mxu0 0
    %198 = vmatprep.subr.bf16.mxu0 0
    %199 = vmatpush1.bf16.msra.mxu0 0
    %200 = vmatprep.subr.bf16.mxu0 0
    %201 = vmatpush1.bf16.msra.mxu0 0
    %202 = vmatprep.subr.bf16.mxu0 0
    %203 = vmatpush1.bf16.msra.mxu0 0
    %204 = vmatprep.subr.bf16.mxu0 %v77
    %205 = vmatpush1.bf16.msra.mxu0 %v53
    %206 = vmatprep.subr.bf16.mxu0 %v76
    %207 = vmatpush1.bf16.msra.mxu0 %v52
    %208 = vmatprep.subr.bf16.mxu0 %v75
    %209 = vmatpush1.bf16.msra.mxu0 %v51
    %210 = vmatprep.subr.bf16.mxu0 %v74
    %211 = vmatpush1.bf16.msra.mxu0 %v50
    %212 = vmatprep.subr.bf16.mxu0 0
    %213 = vmatpush2.bf16.msra.mxu0 0
    %214 = vmatprep.subr.bf16.mxu0 0
    %215 = vmatpush2.bf16.msra.mxu0 0
    %216 = vmatprep.subr.bf16.mxu0 0
    %217 = vmatpush2.bf16.msra.mxu0 0
    %218 = vmatprep.subr.bf16.mxu0 0
    %219 = vmatpush2.bf16.msra.mxu0 0
    %220 = vmatprep.subr.bf16.mxu0 0
    %221 = vmatpush2.bf16.msra.mxu0 0
    %222 = vmatprep.subr.bf16.mxu0 0
    %223 = vmatpush2.bf16.msra.mxu0 0
    %224 = vmatprep.subr.bf16.mxu0 0
    %225 = vmatpush2.bf16.msra.mxu0 0
    %226 = vmatprep.subr.bf16.mxu0 0
    %227 = vmatpush2.bf16.msra.mxu0 0
    %228 = vmatprep.mubr.bf16.mxu0 0
    %229 = vmatmul.mubr.bf16.gmra.mxu0 %v194
    %v230 = vpop.f32.mrf.mxu0
    %v231 = vadd.f32 0.0, %v230
    %v232 = vpop.f32.mrf.mxu0
    %v233 = vadd.f32 0.0, %v232
    %v234 = vpop.f32.mrf.mxu0
    %v235 = vpop.f32.mrf.mxu0
    %236 = vdwg.mxu0
    %v237 = vadd.f32 %v154, %v231
    %v238 = vlaneseq
    %v239 = vshrl.u32 %v238, 7
    %v240 = vsub.s32 0, %v239
    %v241 = vrot.slane %v86, %v240
    %v242 = vadd.f32 %v237, %v241
    %v243 = vtanh.pop %v242
    %v244 = vmul.f32 %v243, 0.5
    %v245 = vadd.f32 %v244, 0.5
    %v246 = vsel %vm188, %v243, %v245
    %v247 = vmul.f32 %v246, 0.0
    %249 = vrot.lane.b32.xlu0 %v246, 64
    %v250 = vpop.permute.xlu0 %249
    %v252 = vmul.f32 %v246, %v250
    %254 = vrot.lane.b32.xlu0 %v252, 32
    %v255 = vpop.permute.xlu0 %254
    %v257 = vadd.f32 %v247, %v255
    %v258 = vtanh.pop %v257
    %260 = vrot.lane.b32.xlu0 %v258, 64
    %v261 = vpop.permute.xlu0 %260
    %v263 = vmul.f32 %v246, %v261
    %v264 = vpack.c.bf16 %v263, %v263
    %266 = vrot.lane.b32.xlu0 %v264, 32
    %v267 = vpop.permute.xlu0 %266
    %v272 = vunpack.c.l.b16 %v82
    %v273 = vunpack.c.l.b16 %v83
    %v274 = vunpack.c.l.b16 %v84
    %v275 = vunpack.c.l.b16 %v85
    %v276 = vpack.c.b16 %v273, %v272
    %v277 = vpack.c.b16 %v275, %v274
    %vm280 = vcmask 261120
    %v282 = vsel %vm280, %v267, 0
    %284 = vmatprep.subr.bf16.mxu0 0
    %285 = vmatpush1.bf16.msra.mxu0 0
    %286 = vmatprep.subr.bf16.mxu0 0
    %287 = vmatpush1.bf16.msra.mxu0 0
    %288 = vmatprep.subr.bf16.mxu0 0
    %289 = vmatpush1.bf16.msra.mxu0 0
    %290 = vmatprep.subr.bf16.mxu0 0
    %291 = vmatpush1.bf16.msra.mxu0 0
    %292 = vmatprep.subr.bf16.mxu0 0
    %293 = vmatpush1.bf16.msra.mxu0 0
    %294 = vmatprep.subr.bf16.mxu0 0
    %295 = vmatpush1.bf16.msra.mxu0 0
    %296 = vmatprep.subr.bf16.mxu0 0
    %297 = vmatpush1.bf16.msra.mxu0 %v277
    %298 = vmatprep.subr.bf16.mxu0 0
    %299 = vmatpush1.bf16.msra.mxu0 %v276
    %300 = vmatprep.subr.bf16.mxu0 0
    %301 = vmatpush2.bf16.msra.mxu0 0
    %302 = vmatprep.subr.bf16.mxu0 0
    %303 = vmatpush2.bf16.msra.mxu0 0
    %304 = vmatprep.subr.bf16.mxu0 0
    %305 = vmatpush2.bf16.msra.mxu0 0
    %306 = vmatprep.subr.bf16.mxu0 0
    %307 = vmatpush2.bf16.msra.mxu0 0
    %308 = vmatprep.subr.bf16.mxu0 0
    %309 = vmatpush2.bf16.msra.mxu0 0
    %310 = vmatprep.subr.bf16.mxu0 0
    %311 = vmatpush2.bf16.msra.mxu0 0
    %312 = vmatprep.subr.bf16.mxu0 0
    %313 = vmatpush2.bf16.msra.mxu0 0
    %314 = vmatprep.subr.bf16.mxu0 0
    %315 = vmatpush2.bf16.msra.mxu0 0
    %316 = vmatprep.mubr.bf16.mxu0 0
    %317 = vmatmul.mubr.bf16.gmra.mxu0 %v282
    %v318 = vpop.f32.mrf.mxu0
    %v319 = vadd.f32 %v233, %v318
    %v320 = vpop.f32.mrf.mxu0
    %v321 = vpop.f32.mrf.mxu0
    %v322 = vpop.f32.mrf.mxu0
    %323 = vdwg.mxu0
    %v324 = vlaneseq
    %v325 = vshrl.u32 %v324, 7
    %v326 = vsub.s32 0, %v325
    %v327 = vrot.slane %v87, %v326
    %v328 = vadd.f32 %v319, %v327
    %v329 = vtanh.pop %v328
    %v330 = vmul.f32 %v329, 0.5
    %v331 = vadd.f32 %v330, 0.5
    %v332 = vsel %vm188, %v329, %v331
    %v333 = vmul.f32 %v332, 0.0
    %335 = vrot.lane.b32.xlu0 %v332, 64
    %v336 = vpop.permute.xlu0 %335
    %v338 = vmul.f32 %v332, %v336
    %340 = vrot.lane.b32.xlu0 %v338, 32
    %v341 = vpop.permute.xlu0 %340
    %v343 = vadd.f32 %v333, %v341
    %v344 = vtanh.pop %v343
    %346 = vrot.lane.b32.xlu0 %v344, 64
    %v347 = vpop.permute.xlu0 %346
    %v349 = vmul.f32 %v332, %v347
    %351 = vrot.lane.b32.xlu0 %v263, 32
    %v352 = vpop.permute.xlu0 %351
    %354 = vst.msk [vmem:[#allocation2] sm:$0xff] %vm280, %v352
    %356 = vrot.lane.b32.xlu0 %v349, 64
    %v357 = vpop.permute.xlu0 %356
    %vm359 = vcmask 523520
    %360 = vst.msk [vmem:[#allocation2] sm:$0xff] %vm359, %v357
    %v361 = vld [vmem:[#allocation2] sm:$0xff]
    %v362 = vpack.c.bf16 %v361, %v361
    %v364 = vsel %vm189, %v362, 0
    %366 = vmatprep.subr.bf16.mxu0 0
    %367 = vmatpush1.bf16.msra.mxu0 0
    %368 = vmatprep.subr.bf16.mxu0 0
    %369 = vmatpush1.bf16.msra.mxu0 0
    %370 = vmatprep.subr.bf16.mxu0 0
    %371 = vmatpush1.bf16.msra.mxu0 0
    %372 = vmatprep.subr.bf16.mxu0 0
    %373 = vmatpush1.bf16.msra.mxu0 0
    %374 = vmatprep.subr.bf16.mxu0 %v77
    %375 = vmatpush1.bf16.msra.mxu0 %v53
    %376 = vmatprep.subr.bf16.mxu0 %v76
    %377 = vmatpush1.bf16.msra.mxu0 %v52
    %378 = vmatprep.subr.bf16.mxu0 %v75
    %379 = vmatpush1.bf16.msra.mxu0 %v51
    %380 = vmatprep.subr.bf16.mxu0 %v74
    %381 = vmatpush1.bf16.msra.mxu0 %v50
    %382 = vmatprep.subr.bf16.mxu0 0
    %383 = vmatpush2.bf16.msra.mxu0 0
    %384 = vmatprep.subr.bf16.mxu0 0
    %385 = vmatpush2.bf16.msra.mxu0 0
    %386 = vmatprep.subr.bf16.mxu0 0
    %387 = vmatpush2.bf16.msra.mxu0 0
    %388 = vmatprep.subr.bf16.mxu0 0
    %389 = vmatpush2.bf16.msra.mxu0 0
    %390 = vmatprep.subr.bf16.mxu0 0
    %391 = vmatpush2.bf16.msra.mxu0 0
    %392 = vmatprep.subr.bf16.mxu0 0
    %393 = vmatpush2.bf16.msra.mxu0 0
    %394 = vmatprep.subr.bf16.mxu0 0
    %395 = vmatpush2.bf16.msra.mxu0 0
    %396 = vmatprep.subr.bf16.mxu0 0
    %397 = vmatpush2.bf16.msra.mxu0 0
    %398 = vmatprep.mubr.bf16.mxu0 0
    %399 = vmatmul.mubr.bf16.gmra.mxu0 %v364
    %v400 = vpop.f32.mrf.mxu0
    %v401 = vadd.f32 0.0, %v400
    %v402 = vpop.f32.mrf.mxu0
    %v403 = vadd.f32 0.0, %v402
    %v404 = vpop.f32.mrf.mxu0
    %v405 = vpop.f32.mrf.mxu0
    %406 = vdwg.mxu0
    %v407 = vadd.f32 %v157, %v401
    %v408 = vadd.f32 %v407, %v241
    %v409 = vtanh.pop %v408
    %v410 = vmul.f32 %v409, 0.5
    %v411 = vadd.f32 %v410, 0.5
    %v412 = vsel %vm188, %v409, %v411
    %v413 = vmul.f32 %v412, %v257
    %415 = vrot.lane.b32.xlu0 %v412, 64
    %v416 = vpop.permute.xlu0 %415
    %v418 = vmul.f32 %v412, %v416
    %420 = vrot.lane.b32.xlu0 %v418, 32
    %v421 = vpop.permute.xlu0 %420
    %v423 = vadd.f32 %v413, %v421
    %v424 = vtanh.pop %v423
    %426 = vrot.lane.b32.xlu0 %v424, 64
    %v427 = vpop.permute.xlu0 %426
    %v429 = vmul.f32 %v412, %v427
    %v430 = vpack.c.bf16 %v429, %v429
    %432 = vrot.lane.b32.xlu0 %v430, 32
    %v433 = vpop.permute.xlu0 %432
    %v435 = vsel %vm280, %v433, 0
    %437 = vmatprep.subr.bf16.mxu0 0
    %438 = vmatpush1.bf16.msra.mxu0 0
    %439 = vmatprep.subr.bf16.mxu0 0
    %440 = vmatpush1.bf16.msra.mxu0 0
    %441 = vmatprep.subr.bf16.mxu0 0
    %442 = vmatpush1.bf16.msra.mxu0 0
    %443 = vmatprep.subr.bf16.mxu0 0
    %444 = vmatpush1.bf16.msra.mxu0 0
    %445 = vmatprep.subr.bf16.mxu0 0
    %446 = vmatpush1.bf16.msra.mxu0 0
    %447 = vmatprep.subr.bf16.mxu0 0
    %448 = vmatpush1.bf16.msra.mxu0 0
    %449 = vmatprep.subr.bf16.mxu0 0
    %450 = vmatpush1.bf16.msra.mxu0 %v277
    %451 = vmatprep.subr.bf16.mxu0 0
    %452 = vmatpush1.bf16.msra.mxu0 %v276
    %453 = vmatprep.subr.bf16.mxu0 0
    %454 = vmatpush2.bf16.msra.mxu0 0
    %455 = vmatprep.subr.bf16.mxu0 0
    %456 = vmatpush2.bf16.msra.mxu0 0
    %457 = vmatprep.subr.bf16.mxu0 0
    %458 = vmatpush2.bf16.msra.mxu0 0
    %459 = vmatprep.subr.bf16.mxu0 0
    %460 = vmatpush2.bf16.msra.mxu0 0
    %461 = vmatprep.subr.bf16.mxu0 0
    %462 = vmatpush2.bf16.msra.mxu0 0
    %463 = vmatprep.subr.bf16.mxu0 0
    %464 = vmatpush2.bf16.msra.mxu0 0
    %465 = vmatprep.subr.bf16.mxu0 0
    %466 = vmatpush2.bf16.msra.mxu0 0
    %467 = vmatprep.subr.bf16.mxu0 0
    %468 = vmatpush2.bf16.msra.mxu0 0
    %469 = vmatprep.mubr.bf16.mxu0 0
    %470 = vmatmul.mubr.bf16.gmra.mxu0 %v435
    %v471 = vpop.f32.mrf.mxu0
    %v472 = vadd.f32 %v403, %v471
    %v473 = vpop.f32.mrf.mxu0
    %v474 = vpop.f32.mrf.mxu0
    %v475 = vpop.f32.mrf.mxu0
    %476 = vdwg.mxu0
    %v477 = vadd.f32 %v472, %v327
    %v478 = vtanh.pop %v477
    %v479 = vmul.f32 %v478, 0.5
    %v480 = vadd.f32 %v479, 0.5
    %v481 = vsel %vm188, %v478, %v480
    %v482 = vmul.f32 %v481, %v343
    %484 = vrot.lane.b32.xlu0 %v481, 64
    %v485 = vpop.permute.xlu0 %484
    %v487 = vmul.f32 %v481, %v485
    %489 = vrot.lane.b32.xlu0 %v487, 32
    %v490 = vpop.permute.xlu0 %489
    %v492 = vadd.f32 %v482, %v490
    %v493 = vtanh.pop %v492
    %495 = vrot.lane.b32.xlu0 %v493, 64
    %v496 = vpop.permute.xlu0 %495
    %v498 = vmul.f32 %v481, %v496
    %500 = vrot.lane.b32.xlu0 %v429, 32
    %v501 = vpop.permute.xlu0 %500
    %503 = vst.msk [vmem:[#allocation2] sm:$0xff] %vm280, %v501
    %505 = vrot.lane.b32.xlu0 %v498, 64
    %v506 = vpop.permute.xlu0 %505
    %508 = vst.msk [vmem:[#allocation2] sm:$0xff] %vm359, %v506
    %v509 = vld [vmem:[#allocation2] sm:$0xff]
    %v510 = vpack.c.bf16 %v509, %v509
    %v512 = vsel %vm189, %v510, 0
    %514 = vmatprep.subr.bf16.mxu0 0
    %515 = vmatpush1.bf16.msra.mxu0 0
    %516 = vmatprep.subr.bf16.mxu0 0
    %517 = vmatpush1.bf16.msra.mxu0 0
    %518 = vmatprep.subr.bf16.mxu0 0
    %519 = vmatpush1.bf16.msra.mxu0 0
    %520 = vmatprep.subr.bf16.mxu0 0
    %521 = vmatpush1.bf16.msra.mxu0 0
    %522 = vmatprep.subr.bf16.mxu0 %v77
    %523 = vmatpush1.bf16.msra.mxu0 %v53
    %524 = vmatprep.subr.bf16.mxu0 %v76
    %525 = vmatpush1.bf16.msra.mxu0 %v52
    %526 = vmatprep.subr.bf16.mxu0 %v75
    %527 = vmatpush1.bf16.msra.mxu0 %v51
    %528 = vmatprep.subr.bf16.mxu0 %v74
    %529 = vmatpush1.bf16.msra.mxu0 %v50
    %530 = vmatprep.subr.bf16.mxu0 0
    %531 = vmatpush2.bf16.msra.mxu0 0
    %532 = vmatprep.subr.bf16.mxu0 0
    %533 = vmatpush2.bf16.msra.mxu0 0
    %534 = vmatprep.subr.bf16.mxu0 0
    %535 = vmatpush2.bf16.msra.mxu0 0
    %536 = vmatprep.subr.bf16.mxu0 0
    %537 = vmatpush2.bf16.msra.mxu0 0
    %538 = vmatprep.subr.bf16.mxu0 0
    %539 = vmatpush2.bf16.msra.mxu0 0
    %540 = vmatprep.subr.bf16.mxu0 0
    %541 = vmatpush2.bf16.msra.mxu0 0
    %542 = vmatprep.subr.bf16.mxu0 0
    %543 = vmatpush2.bf16.msra.mxu0 0
    %544 = vmatprep.subr.bf16.mxu0 0
    %545 = vmatpush2.bf16.msra.mxu0 0
    %546 = vmatprep.mubr.bf16.mxu0 0
    %547 = vmatmul.mubr.bf16.gmra.mxu0 %v512
    %v548 = vpop.f32.mrf.mxu0
    %v549 = vadd.f32 0.0, %v548
    %v550 = vpop.f32.mrf.mxu0
    %v551 = vadd.f32 0.0, %v550
    %v552 = vpop.f32.mrf.mxu0
    %v553 = vpop.f32.mrf.mxu0
    %554 = vdwg.mxu0
    %v555 = vadd.f32 %v162, %v549
    %v556 = vadd.f32 %v555, %v241
    %v557 = vtanh.pop %v556
    %v558 = vmul.f32 %v557, 0.5
    %v559 = vadd.f32 %v558, 0.5
    %v560 = vsel %vm188, %v557, %v559
    %v561 = vmul.f32 %v560, %v423
    %563 = vrot.lane.b32.xlu0 %v560, 64
    %v564 = vpop.permute.xlu0 %563
    %v566 = vmul.f32 %v560, %v564
    %568 = vrot.lane.b32.xlu0 %v566, 32
    %v569 = vpop.permute.xlu0 %568
    %v571 = vadd.f32 %v561, %v569
    %v572 = vtanh.pop %v571
    %574 = vrot.lane.b32.xlu0 %v572, 64
    %v575 = vpop.permute.xlu0 %574
    %v577 = vmul.f32 %v560, %v575
    %v578 = vpack.c.bf16 %v577, %v577
    %580 = vrot.lane.b32.xlu0 %v578, 32
    %v581 = vpop.permute.xlu0 %580
    %v583 = vsel %vm280, %v581, 0
    %585 = vmatprep.subr.bf16.mxu0 0
    %586 = vmatpush1.bf16.msra.mxu0 0
    %587 = vmatprep.subr.bf16.mxu0 0
    %588 = vmatpush1.bf16.msra.mxu0 0
    %589 = vmatprep.subr.bf16.mxu0 0
    %590 = vmatpush1.bf16.msra.mxu0 0
    %591 = vmatprep.subr.bf16.mxu0 0
    %592 = vmatpush1.bf16.msra.mxu0 0
    %593 = vmatprep.subr.bf16.mxu0 0
    %594 = vmatpush1.bf16.msra.mxu0 0
    %595 = vmatprep.subr.bf16.mxu0 0
    %596 = vmatpush1.bf16.msra.mxu0 0
    %597 = vmatprep.subr.bf16.mxu0 0
    %598 = vmatpush1.bf16.msra.mxu0 %v277
    %599 = vmatprep.subr.bf16.mxu0 0
    %600 = vmatpush1.bf16.msra.mxu0 %v276
    %601 = vmatprep.subr.bf16.mxu0 0
    %602 = vmatpush2.bf16.msra.mxu0 0
    %603 = vmatprep.subr.bf16.mxu0 0
    %604 = vmatpush2.bf16.msra.mxu0 0
    %605 = vmatprep.subr.bf16.mxu0 0
    %606 = vmatpush2.bf16.msra.mxu0 0
    %607 = vmatprep.subr.bf16.mxu0 0
    %608 = vmatpush2.bf16.msra.mxu0 0
    %609 = vmatprep.subr.bf16.mxu0 0
    %610 = vmatpush2.bf16.msra.mxu0 0
    %611 = vmatprep.subr.bf16.mxu0 0
    %612 = vmatpush2.bf16.msra.mxu0 0
    %613 = vmatprep.subr.bf16.mxu0 0
    %614 = vmatpush2.bf16.msra.mxu0 0
    %615 = vmatprep.subr.bf16.mxu0 0
    %616 = vmatpush2.bf16.msra.mxu0 0
    %617 = vmatprep.mubr.bf16.mxu0 0
    %618 = vmatmul.mubr.bf16.gmra.mxu0 %v583
    %v619 = vpop.f32.mrf.mxu0
    %v620 = vadd.f32 %v551, %v619
    %v621 = vpop.f32.mrf.mxu0
    %v622 = vpop.f32.mrf.mxu0
    %v623 = vpop.f32.mrf.mxu0
    %624 = vdwg.mxu0
    %v625 = vadd.f32 %v620, %v327
    %v626 = vtanh.pop %v625
    %v627 = vmul.f32 %v626, 0.5
    %v628 = vadd.f32 %v627, 0.5
    %v629 = vsel %vm188, %v626, %v628
    %v630 = vmul.f32 %v629, %v492
    %632 = vrot.lane.b32.xlu0 %v629, 64
    %v633 = vpop.permute.xlu0 %632
    %v635 = vmul.f32 %v629, %v633
    %637 = vrot.lane.b32.xlu0 %v635, 32
    %v638 = vpop.permute.xlu0 %637
    %v640 = vadd.f32 %v630, %v638
    %v641 = vtanh.pop %v640
    %643 = vrot.lane.b32.xlu0 %v641, 64
    %v644 = vpop.permute.xlu0 %643
    %v646 = vmul.f32 %v629, %v644
    %648 = vrot.lane.b32.xlu0 %v577, 32
    %v649 = vpop.permute.xlu0 %648
    %651 = vst.msk [vmem:[#allocation2] sm:$0xff] %vm280, %v649
    %653 = vrot.lane.b32.xlu0 %v646, 64
    %v654 = vpop.permute.xlu0 %653
    %656 = vst.msk [vmem:[#allocation2] sm:$0xff] %vm359, %v654
    %v657 = vld [vmem:[#allocation2] sm:$0xff]
    %v658 = vpack.c.bf16 %v657, %v657
    %v660 = vsel %vm189, %v658, 0
    %662 = vmatprep.subr.bf16.mxu0 0
    %663 = vmatpush1.bf16.msra.mxu0 0
    %664 = vmatprep.subr.bf16.mxu0 0
    %665 = vmatpush1.bf16.msra.mxu0 0
    %666 = vmatprep.subr.bf16.mxu0 0
    %667 = vmatpush1.bf16.msra.mxu0 0
    %668 = vmatprep.subr.bf16.mxu0 0
    %669 = vmatpush1.bf16.msra.mxu0 0
    %670 = vmatprep.subr.bf16.mxu0 %v77
    %671 = vmatpush1.bf16.msra.mxu0 %v53
    %672 = vmatprep.subr.bf16.mxu0 %v76
    %673 = vmatpush1.bf16.msra.mxu0 %v52
    %674 = vmatprep.subr.bf16.mxu0 %v75
    %675 = vmatpush1.bf16.msra.mxu0 %v51
    %676 = vmatprep.subr.bf16.mxu0 %v74
    %677 = vmatpush1.bf16.msra.mxu0 %v50
    %678 = vmatprep.subr.bf16.mxu0 0
    %679 = vmatpush2.bf16.msra.mxu0 0
    %680 = vmatprep.subr.bf16.mxu0 0
    %681 = vmatpush2.bf16.msra.mxu0 0
    %682 = vmatprep.subr.bf16.mxu0 0
    %683 = vmatpush2.bf16.msra.mxu0 0
    %684 = vmatprep.subr.bf16.mxu0 0
    %685 = vmatpush2.bf16.msra.mxu0 0
    %686 = vmatprep.subr.bf16.mxu0 0
    %687 = vmatpush2.bf16.msra.mxu0 0
    %688 = vmatprep.subr.bf16.mxu0 0
    %689 = vmatpush2.bf16.msra.mxu0 0
    %690 = vmatprep.subr.bf16.mxu0 0
    %691 = vmatpush2.bf16.msra.mxu0 0
    %692 = vmatprep.subr.bf16.mxu0 0
    %693 = vmatpush2.bf16.msra.mxu0 0
    %694 = vmatprep.mubr.bf16.mxu0 0
    %695 = vmatmul.mubr.bf16.gmra.mxu0 %v660
    %v696 = vpop.f32.mrf.mxu0
    %v697 = vadd.f32 0.0, %v696
    %v698 = vpop.f32.mrf.mxu0
    %v699 = vadd.f32 0.0, %v698
    %v700 = vpop.f32.mrf.mxu0
    %v701 = vpop.f32.mrf.mxu0
    %702 = vdwg.mxu0
    %v703 = vadd.f32 %v165, %v697
    %v704 = vadd.f32 %v703, %v241
    %v705 = vtanh.pop %v704
    %v706 = vmul.f32 %v705, 0.5
    %v707 = vadd.f32 %v706, 0.5
    %v708 = vsel %vm188, %v705, %v707
    %v709 = vmul.f32 %v708, %v571
    %711 = vrot.lane.b32.xlu0 %v708, 64
    %v712 = vpop.permute.xlu0 %711
    %v714 = vmul.f32 %v708, %v712
    %716 = vrot.lane.b32.xlu0 %v714, 32
    %v717 = vpop.permute.xlu0 %716
    %v719 = vadd.f32 %v709, %v717
    %v720 = vtanh.pop %v719
    %722 = vrot.lane.b32.xlu0 %v720, 64
    %v723 = vpop.permute.xlu0 %722
    %v725 = vmul.f32 %v708, %v723
    %v726 = vpack.c.bf16 %v725, %v725
    %728 = vrot.lane.b32.xlu0 %v726, 32
    %v729 = vpop.permute.xlu0 %728
    %v731 = vsel %vm280, %v729, 0
    %733 = vmatprep.subr.bf16.mxu0 0
    %734 = vmatpush1.bf16.msra.mxu0 0
    %735 = vmatprep.subr.bf16.mxu0 0
    %736 = vmatpush1.bf16.msra.mxu0 0
    %737 = vmatprep.subr.bf16.mxu0 0
    %738 = vmatpush1.bf16.msra.mxu0 0
    %739 = vmatprep.subr.bf16.mxu0 0
    %740 = vmatpush1.bf16.msra.mxu0 0
    %741 = vmatprep.subr.bf16.mxu0 0
    %742 = vmatpush1.bf16.msra.mxu0 0
    %743 = vmatprep.subr.bf16.mxu0 0
    %744 = vmatpush1.bf16.msra.mxu0 0
    %745 = vmatprep.subr.bf16.mxu0 0
    %746 = vmatpush1.bf16.msra.mxu0 %v277
    %747 = vmatprep.subr.bf16.mxu0 0
    %748 = vmatpush1.bf16.msra.mxu0 %v276
    %749 = vmatprep.subr.bf16.mxu0 0
    %750 = vmatpush2.bf16.msra.mxu0 0
    %751 = vmatprep.subr.bf16.mxu0 0
    %752 = vmatpush2.bf16.msra.mxu0 0
    %753 = vmatprep.subr.bf16.mxu0 0
    %754 = vmatpush2.bf16.msra.mxu0 0
    %755 = vmatprep.subr.bf16.mxu0 0
    %756 = vmatpush2.bf16.msra.mxu0 0
    %757 = vmatprep.subr.bf16.mxu0 0
    %758 = vmatpush2.bf16.msra.mxu0 0
    %759 = vmatprep.subr.bf16.mxu0 0
    %760 = vmatpush2.bf16.msra.mxu0 0
    %761 = vmatprep.subr.bf16.mxu0 0
    %762 = vmatpush2.bf16.msra.mxu0 0
    %763 = vmatprep.subr.bf16.mxu0 0
    %764 = vmatpush2.bf16.msra.mxu0 0
    %765 = vmatprep.mubr.bf16.mxu0 0
    %766 = vmatmul.mubr.bf16.gmra.mxu0 %v731
    %v767 = vpop.f32.mrf.mxu0
    %v768 = vadd.f32 %v699, %v767
    %v769 = vpop.f32.mrf.mxu0
    %v770 = vpop.f32.mrf.mxu0
    %v771 = vpop.f32.mrf.mxu0
    %772 = vdwg.mxu0
    %v773 = vadd.f32 %v768, %v327
    %v774 = vtanh.pop %v773
    %v775 = vmul.f32 %v774, 0.5
    %v776 = vadd.f32 %v775, 0.5
    %v777 = vsel %vm188, %v774, %v776
    %v778 = vmul.f32 %v777, %v640
    %780 = vrot.lane.b32.xlu0 %v777, 64
    %v781 = vpop.permute.xlu0 %780
    %v783 = vmul.f32 %v777, %v781
    %785 = vrot.lane.b32.xlu0 %v783, 32
    %v786 = vpop.permute.xlu0 %785
    %v788 = vadd.f32 %v778, %v786
    %v789 = vtanh.pop %v788
    %791 = vrot.lane.b32.xlu0 %v789, 64
    %v792 = vpop.permute.xlu0 %791
    %v794 = vmul.f32 %v777, %v792
    %796 = vrot.lane.b32.xlu0 %v725, 32
    %v797 = vpop.permute.xlu0 %796
    %799 = vst.msk [vmem:[#allocation2] sm:$0xff] %vm280, %v797
    %801 = vrot.lane.b32.xlu0 %v794, 64
    %v802 = vpop.permute.xlu0 %801
    %804 = vst.msk [vmem:[#allocation2] sm:$0xff] %vm359, %v802
    %v805 = vld [vmem:[#allocation2] sm:$0xff]
    %v806 = vpack.c.bf16 %v805, %v805
    %v808 = vsel %vm189, %v806, 0
    %810 = vmatprep.subr.bf16.mxu0 0
    %811 = vmatpush1.bf16.msra.mxu0 0
    %812 = vmatprep.subr.bf16.mxu0 0
    %813 = vmatpush1.bf16.msra.mxu0 0
    %814 = vmatprep.subr.bf16.mxu0 0
    %815 = vmatpush1.bf16.msra.mxu0 0
    %816 = vmatprep.subr.bf16.mxu0 0
    %817 = vmatpush1.bf16.msra.mxu0 0
    %818 = vmatprep.subr.bf16.mxu0 %v77
    %819 = vmatpush1.bf16.msra.mxu0 %v53
    %820 = vmatprep.subr.bf16.mxu0 %v76
    %821 = vmatpush1.bf16.msra.mxu0 %v52
    %822 = vmatprep.subr.bf16.mxu0 %v75
    %823 = vmatpush1.bf16.msra.mxu0 %v51
    %824 = vmatprep.subr.bf16.mxu0 %v74
    %825 = vmatpush1.bf16.msra.mxu0 %v50
    %826 = vmatprep.subr.bf16.mxu0 0
    %827 = vmatpush2.bf16.msra.mxu0 0
    %828 = vmatprep.subr.bf16.mxu0 0
    %829 = vmatpush2.bf16.msra.mxu0 0
    %830 = vmatprep.subr.bf16.mxu0 0
    %831 = vmatpush2.bf16.msra.mxu0 0
    %832 = vmatprep.subr.bf16.mxu0 0
    %833 = vmatpush2.bf16.msra.mxu0 0
    %834 = vmatprep.subr.bf16.mxu0 0
    %835 = vmatpush2.bf16.msra.mxu0 0
    %836 = vmatprep.subr.bf16.mxu0 0
    %837 = vmatpush2.bf16.msra.mxu0 0
    %838 = vmatprep.subr.bf16.mxu0 0
    %839 = vmatpush2.bf16.msra.mxu0 0
    %840 = vmatprep.subr.bf16.mxu0 0
    %841 = vmatpush2.bf16.msra.mxu0 0
    %842 = vmatprep.mubr.bf16.mxu0 0
    %843 = vmatmul.mubr.bf16.gmra.mxu0 %v808
    %v844 = vpop.f32.mrf.mxu0
    %v845 = vadd.f32 0.0, %v844
    %v846 = vpop.f32.mrf.mxu0
    %v847 = vadd.f32 0.0, %v846
    %v848 = vpop.f32.mrf.mxu0
    %v849 = vpop.f32.mrf.mxu0
    %850 = vdwg.mxu0
    %v851 = vadd.f32 %v170, %v845
    %v852 = vadd.f32 %v851, %v241
    %v853 = vtanh.pop %v852
    %v854 = vmul.f32 %v853, 0.5
    %v855 = vadd.f32 %v854, 0.5
    %v856 = vsel %vm188, %v853, %v855
    %v857 = vmul.f32 %v856, %v719
    %859 = vrot.lane.b32.xlu0 %v856, 64
    %v860 = vpop.permute.xlu0 %859
    %v862 = vmul.f32 %v856, %v860
    %864 = vrot.lane.b32.xlu0 %v862, 32
    %v865 = vpop.permute.xlu0 %864
    %v867 = vadd.f32 %v857, %v865
    %v868 = vtanh.pop %v867
    %870 = vrot.lane.b32.xlu0 %v868, 64
    %v871 = vpop.permute.xlu0 %870
    %v873 = vmul.f32 %v856, %v871
    %v874 = vpack.c.bf16 %v873, %v873
    %876 = vrot.lane.b32.xlu0 %v874, 32
    %v877 = vpop.permute.xlu0 %876
    %v879 = vsel %vm280, %v877, 0
    %881 = vmatprep.subr.bf16.mxu0 0
    %882 = vmatpush1.bf16.msra.mxu0 0
    %883 = vmatprep.subr.bf16.mxu0 0
    %884 = vmatpush1.bf16.msra.mxu0 0
    %885 = vmatprep.subr.bf16.mxu0 0
    %886 = vmatpush1.bf16.msra.mxu0 0
    %887 = vmatprep.subr.bf16.mxu0 0
    %888 = vmatpush1.bf16.msra.mxu0 0
    %889 = vmatprep.subr.bf16.mxu0 0
    %890 = vmatpush1.bf16.msra.mxu0 0
    %891 = vmatprep.subr.bf16.mxu0 0
    %892 = vmatpush1.bf16.msra.mxu0 0
    %893 = vmatprep.subr.bf16.mxu0 0
    %894 = vmatpush1.bf16.msra.mxu0 %v277
    %895 = vmatprep.subr.bf16.mxu0 0
    %896 = vmatpush1.bf16.msra.mxu0 %v276
    %897 = vmatprep.subr.bf16.mxu0 0
    %898 = vmatpush2.bf16.msra.mxu0 0
    %899 = vmatprep.subr.bf16.mxu0 0
    %900 = vmatpush2.bf16.msra.mxu0 0
    %901 = vmatprep.subr.bf16.mxu0 0
    %902 = vmatpush2.bf16.msra.mxu0 0
    %903 = vmatprep.subr.bf16.mxu0 0
    %904 = vmatpush2.bf16.msra.mxu0 0
    %905 = vmatprep.subr.bf16.mxu0 0
    %906 = vmatpush2.bf16.msra.mxu0 0
    %907 = vmatprep.subr.bf16.mxu0 0
    %908 = vmatpush2.bf16.msra.mxu0 0
    %909 = vmatprep.subr.bf16.mxu0 0
    %910 = vmatpush2.bf16.msra.mxu0 0
    %911 = vmatprep.subr.bf16.mxu0 0
    %912 = vmatpush2.bf16.msra.mxu0 0
    %913 = vmatprep.mubr.bf16.mxu0 0
    %914 = vmatmul.mubr.bf16.gmra.mxu0 %v879
    %v915 = vpop.f32.mrf.mxu0
    %v916 = vadd.f32 %v847, %v915
    %v917 = vpop.f32.mrf.mxu0
    %v918 = vpop.f32.mrf.mxu0
    %v919 = vpop.f32.mrf.mxu0
    %920 = vdwg.mxu0
    %v921 = vadd.f32 %v916, %v327
    %v922 = vtanh.pop %v921
    %v923 = vmul.f32 %v922, 0.5
    %v924 = vadd.f32 %v923, 0.5
    %v925 = vsel %vm188, %v922, %v924
    %v926 = vmul.f32 %v925, %v788
    %928 = vrot.lane.b32.xlu0 %v925, 64
    %v929 = vpop.permute.xlu0 %928
    %v931 = vmul.f32 %v925, %v929
    %933 = vrot.lane.b32.xlu0 %v931, 32
    %v934 = vpop.permute.xlu0 %933
    %v936 = vadd.f32 %v926, %v934
    %v937 = vtanh.pop %v936
    %939 = vrot.lane.b32.xlu0 %v937, 64
    %v940 = vpop.permute.xlu0 %939
    %v942 = vmul.f32 %v925, %v940
    %944 = vrot.lane.b32.xlu0 %v873, 32
    %v945 = vpop.permute.xlu0 %944
    %947 = vst.msk [vmem:[#allocation2] sm:$0xff] %vm280, %v945
    %949 = vrot.lane.b32.xlu0 %v942, 64
    %v950 = vpop.permute.xlu0 %949
    %952 = vst.msk [vmem:[#allocation2] sm:$0xff] %vm359, %v950
    %v953 = vld [vmem:[#allocation2] sm:$0xff]
    %v954 = vpack.c.bf16 %v953, %v953
    %v956 = vsel %vm189, %v954, 0
    %958 = vmatprep.subr.bf16.mxu0 0
    %959 = vmatpush1.bf16.msra.mxu0 0
    %960 = vmatprep.subr.bf16.mxu0 0
    %961 = vmatpush1.bf16.msra.mxu0 0
    %962 = vmatprep.subr.bf16.mxu0 0
    %963 = vmatpush1.bf16.msra.mxu0 0
    %964 = vmatprep.subr.bf16.mxu0 0
    %965 = vmatpush1.bf16.msra.mxu0 0
    %966 = vmatprep.subr.bf16.mxu0 %v77
    %967 = vmatpush1.bf16.msra.mxu0 %v53
    %968 = vmatprep.subr.bf16.mxu0 %v76
    %969 = vmatpush1.bf16.msra.mxu0 %v52
    %970 = vmatprep.subr.bf16.mxu0 %v75
    %971 = vmatpush1.bf16.msra.mxu0 %v51
    %972 = vmatprep.subr.bf16.mxu0 %v74
    %973 = vmatpush1.bf16.msra.mxu0 %v50
    %974 = vmatprep.subr.bf16.mxu0 0
    %975 = vmatpush2.bf16.msra.mxu0 0
    %976 = vmatprep.subr.bf16.mxu0 0
    %977 = vmatpush2.bf16.msra.mxu0 0
    %978 = vmatprep.subr.bf16.mxu0 0
    %979 = vmatpush2.bf16.msra.mxu0 0
    %980 = vmatprep.subr.bf16.mxu0 0
    %981 = vmatpush2.bf16.msra.mxu0 0
    %982 = vmatprep.subr.bf16.mxu0 0
    %983 = vmatpush2.bf16.msra.mxu0 0
    %984 = vmatprep.subr.bf16.mxu0 0
    %985 = vmatpush2.bf16.msra.mxu0 0
    %986 = vmatprep.subr.bf16.mxu0 0
    %987 = vmatpush2.bf16.msra.mxu0 0
    %988 = vmatprep.subr.bf16.mxu0 0
    %989 = vmatpush2.bf16.msra.mxu0 0
    %990 = vmatprep.mubr.bf16.mxu0 0
    %991 = vmatmul.mubr.bf16.gmra.mxu0 %v956
    %v992 = vpop.f32.mrf.mxu0
    %v993 = vadd.f32 0.0, %v992
    %v994 = vpop.f32.mrf.mxu0
    %v995 = vadd.f32 0.0, %v994
    %v996 = vpop.f32.mrf.mxu0
    %v997 = vpop.f32.mrf.mxu0
    %998 = vdwg.mxu0
    %v999 = vadd.f32 %v173, %v993
    %v1000 = vadd.f32 %v999, %v241
    %v1001 = vtanh.pop %v1000
    %v1002 = vmul.f32 %v1001, 0.5
    %v1003 = vadd.f32 %v1002, 0.5
    %v1004 = vsel %vm188, %v1001, %v1003
    %v1005 = vmul.f32 %v1004, %v867
    %1007 = vrot.lane.b32.xlu0 %v1004, 64
    %v1008 = vpop.permute.xlu0 %1007
    %v1010 = vmul.f32 %v1004, %v1008
    %1012 = vrot.lane.b32.xlu0 %v1010, 32
    %v1013 = vpop.permute.xlu0 %1012
    %v1015 = vadd.f32 %v1005, %v1013
    %v1016 = vtanh.pop %v1015
    %1018 = vrot.lane.b32.xlu0 %v1016, 64
    %v1019 = vpop.permute.xlu0 %1018
    %v1021 = vmul.f32 %v1004, %v1019
    %v1022 = vpack.c.bf16 %v1021, %v1021
    %1024 = vrot.lane.b32.xlu0 %v1022, 32
    %v1025 = vpop.permute.xlu0 %1024
    %v1027 = vsel %vm280, %v1025, 0
    %1029 = vmatprep.subr.bf16.mxu0 0
    %1030 = vmatpush1.bf16.msra.mxu0 0
    %1031 = vmatprep.subr.bf16.mxu0 0
    %1032 = vmatpush1.bf16.msra.mxu0 0
    %1033 = vmatprep.subr.bf16.mxu0 0
    %1034 = vmatpush1.bf16.msra.mxu0 0
    %1035 = vmatprep.subr.bf16.mxu0 0
    %1036 = vmatpush1.bf16.msra.mxu0 0
    %1037 = vmatprep.subr.bf16.mxu0 0
    %1038 = vmatpush1.bf16.msra.mxu0 0
    %1039 = vmatprep.subr.bf16.mxu0 0
    %1040 = vmatpush1.bf16.msra.mxu0 0
    %1041 = vmatprep.subr.bf16.mxu0 0
    %1042 = vmatpush1.bf16.msra.mxu0 %v277
    %1043 = vmatprep.subr.bf16.mxu0 0
    %1044 = vmatpush1.bf16.msra.mxu0 %v276
    %1045 = vmatprep.subr.bf16.mxu0 0
    %1046 = vmatpush2.bf16.msra.mxu0 0
    %1047 = vmatprep.subr.bf16.mxu0 0
    %1048 = vmatpush2.bf16.msra.mxu0 0
    %1049 = vmatprep.subr.bf16.mxu0 0
    %1050 = vmatpush2.bf16.msra.mxu0 0
    %1051 = vmatprep.subr.bf16.mxu0 0
    %1052 = vmatpush2.bf16.msra.mxu0 0
    %1053 = vmatprep.subr.bf16.mxu0 0
    %1054 = vmatpush2.bf16.msra.mxu0 0
    %1055 = vmatprep.subr.bf16.mxu0 0
    %1056 = vmatpush2.bf16.msra.mxu0 0
    %1057 = vmatprep.subr.bf16.mxu0 0
    %1058 = vmatpush2.bf16.msra.mxu0 0
    %1059 = vmatprep.subr.bf16.mxu0 0
    %1060 = vmatpush2.bf16.msra.mxu0 0
    %1061 = vmatprep.mubr.bf16.mxu0 0
    %1062 = vmatmul.mubr.bf16.gmra.mxu0 %v1027
    %v1063 = vpop.f32.mrf.mxu0
    %v1064 = vadd.f32 %v995, %v1063
    %v1065 = vpop.f32.mrf.mxu0
    %v1066 = vpop.f32.mrf.mxu0
    %v1067 = vpop.f32.mrf.mxu0
    %1068 = vdwg.mxu0
    %v1069 = vadd.f32 %v1064, %v327
    %v1070 = vtanh.pop %v1069
    %v1071 = vmul.f32 %v1070, 0.5
    %v1072 = vadd.f32 %v1071, 0.5
    %v1073 = vsel %vm188, %v1070, %v1072
    %v1074 = vmul.f32 %v1073, %v936
    %1076 = vrot.lane.b32.xlu0 %v1073, 64
    %v1077 = vpop.permute.xlu0 %1076
    %v1079 = vmul.f32 %v1073, %v1077
    %1081 = vrot.lane.b32.xlu0 %v1079, 32
    %v1082 = vpop.permute.xlu0 %1081
    %v1084 = vadd.f32 %v1074, %v1082
    %v1085 = vtanh.pop %v1084
    %1087 = vrot.lane.b32.xlu0 %v1085, 64
    %v1088 = vpop.permute.xlu0 %1087
    %v1090 = vmul.f32 %v1073, %v1088
    %1092 = vrot.lane.b32.xlu0 %v1021, 32
    %v1093 = vpop.permute.xlu0 %1092
    %1095 = vst.msk [vmem:[#allocation2] sm:$0xff] %vm280, %v1093
    %1097 = vrot.lane.b32.xlu0 %v1090, 64
    %v1098 = vpop.permute.xlu0 %1097
    %1100 = vst.msk [vmem:[#allocation2] sm:$0xff] %vm359, %v1098
    %v1101 = vld [vmem:[#allocation2] sm:$0xff]
    %v1102 = vpack.c.bf16 %v1101, %v1101
    %v1104 = vsel %vm189, %v1102, 0
    %1106 = vmatprep.subr.bf16.mxu0 0
    %1107 = vmatpush1.bf16.msra.mxu0 0
    %1108 = vmatprep.subr.bf16.mxu0 0
    %1109 = vmatpush1.bf16.msra.mxu0 0
    %1110 = vmatprep.subr.bf16.mxu0 0
    %1111 = vmatpush1.bf16.msra.mxu0 0
    %1112 = vmatprep.subr.bf16.mxu0 0
    %1113 = vmatpush1.bf16.msra.mxu0 0
    %1114 = vmatprep.subr.bf16.mxu0 %v77
    %1115 = vmatpush1.bf16.msra.mxu0 %v53
    %1116 = vmatprep.subr.bf16.mxu0 %v76
    %1117 = vmatpush1.bf16.msra.mxu0 %v52
    %1118 = vmatprep.subr.bf16.mxu0 %v75
    %1119 = vmatpush1.bf16.msra.mxu0 %v51
    %1120 = vmatprep.subr.bf16.mxu0 %v74
    %1121 = vmatpush1.bf16.msra.mxu0 %v50
    %1122 = vmatprep.subr.bf16.mxu0 0
    %1123 = vmatpush2.bf16.msra.mxu0 0
    %1124 = vmatprep.subr.bf16.mxu0 0
    %1125 = vmatpush2.bf16.msra.mxu0 0
    %1126 = vmatprep.subr.bf16.mxu0 0
    %1127 = vmatpush2.bf16.msra.mxu0 0
    %1128 = vmatprep.subr.bf16.mxu0 0
    %1129 = vmatpush2.bf16.msra.mxu0 0
    %1130 = vmatprep.subr.bf16.mxu0 0
    %1131 = vmatpush2.bf16.msra.mxu0 0
    %1132 = vmatprep.subr.bf16.mxu0 0
    %1133 = vmatpush2.bf16.msra.mxu0 0
    %1134 = vmatprep.subr.bf16.mxu0 0
    %1135 = vmatpush2.bf16.msra.mxu0 0
    %1136 = vmatprep.subr.bf16.mxu0 0
    %1137 = vmatpush2.bf16.msra.mxu0 0
    %1138 = vmatprep.mubr.bf16.mxu0 0
    %1139 = vmatmul.mubr.bf16.gmra.mxu0 %v1104
    %v1140 = vpop.f32.mrf.mxu0
    %v1141 = vadd.f32 0.0, %v1140
    %v1142 = vpop.f32.mrf.mxu0
    %v1143 = vadd.f32 0.0, %v1142
    %v1144 = vpop.f32.mrf.mxu0
    %v1145 = vpop.f32.mrf.mxu0
    %1146 = vdwg.mxu0
    %v1147 = vadd.f32 %v178, %v1141
    %v1148 = vadd.f32 %v1147, %v241
    %v1149 = vtanh.pop %v1148
    %v1150 = vmul.f32 %v1149, 0.5
    %v1151 = vadd.f32 %v1150, 0.5
    %v1152 = vsel %vm188, %v1149, %v1151
    %v1153 = vmul.f32 %v1152, %v1015
    %1155 = vrot.lane.b32.xlu0 %v1152, 64
    %v1156 = vpop.permute.xlu0 %1155
    %v1158 = vmul.f32 %v1152, %v1156
    %1160 = vrot.lane.b32.xlu0 %v1158, 32
    %v1161 = vpop.permute.xlu0 %1160
    %v1163 = vadd.f32 %v1153, %v1161
    %v1164 = vtanh.pop %v1163
    %1166 = vrot.lane.b32.xlu0 %v1164, 64
    %v1167 = vpop.permute.xlu0 %1166
    %v1169 = vmul.f32 %v1152, %v1167
    %v1170 = vpack.c.bf16 %v1169, %v1169
    %1172 = vrot.lane.b32.xlu0 %v1170, 32
    %v1173 = vpop.permute.xlu0 %1172
    %v1175 = vsel %vm280, %v1173, 0
    %1177 = vmatprep.subr.bf16.mxu0 0
    %1178 = vmatpush1.bf16.msra.mxu0 0
    %1179 = vmatprep.subr.bf16.mxu0 0
    %1180 = vmatpush1.bf16.msra.mxu0 0
    %1181 = vmatprep.subr.bf16.mxu0 0
    %1182 = vmatpush1.bf16.msra.mxu0 0
    %1183 = vmatprep.subr.bf16.mxu0 0
    %1184 = vmatpush1.bf16.msra.mxu0 0
    %1185 = vmatprep.subr.bf16.mxu0 0
    %1186 = vmatpush1.bf16.msra.mxu0 0
    %1187 = vmatprep.subr.bf16.mxu0 0
    %1188 = vmatpush1.bf16.msra.mxu0 0
    %1189 = vmatprep.subr.bf16.mxu0 0
    %1190 = vmatpush1.bf16.msra.mxu0 %v277
    %1191 = vmatprep.subr.bf16.mxu0 0
    %1192 = vmatpush1.bf16.msra.mxu0 %v276
    %1193 = vmatprep.subr.bf16.mxu0 0
    %1194 = vmatpush2.bf16.msra.mxu0 0
    %1195 = vmatprep.subr.bf16.mxu0 0
    %1196 = vmatpush2.bf16.msra.mxu0 0
    %1197 = vmatprep.subr.bf16.mxu0 0
    %1198 = vmatpush2.bf16.msra.mxu0 0
    %1199 = vmatprep.subr.bf16.mxu0 0
    %1200 = vmatpush2.bf16.msra.mxu0 0
    %1201 = vmatprep.subr.bf16.mxu0 0
    %1202 = vmatpush2.bf16.msra.mxu0 0
    %1203 = vmatprep.subr.bf16.mxu0 0
    %1204 = vmatpush2.bf16.msra.mxu0 0
    %1205 = vmatprep.subr.bf16.mxu0 0
    %1206 = vmatpush2.bf16.msra.mxu0 0
    %1207 = vmatprep.subr.bf16.mxu0 0
    %1208 = vmatpush2.bf16.msra.mxu0 0
    %1209 = vmatprep.mubr.bf16.mxu0 0
    %1210 = vmatmul.mubr.bf16.gmra.mxu0 %v1175
    %v1211 = vpop.f32.mrf.mxu0
    %v1212 = vadd.f32 %v1143, %v1211
    %v1213 = vpop.f32.mrf.mxu0
    %v1214 = vpop.f32.mrf.mxu0
    %v1215 = vpop.f32.mrf.mxu0
    %1216 = vdwg.mxu0
    %v1217 = vadd.f32 %v1212, %v327
    %v1218 = vtanh.pop %v1217
    %v1219 = vmul.f32 %v1218, 0.5
    %v1220 = vadd.f32 %v1219, 0.5
    %v1221 = vsel %vm188, %v1218, %v1220
    %v1222 = vmul.f32 %v1221, %v1084
    %1224 = vrot.lane.b32.xlu0 %v1221, 64
    %v1225 = vpop.permute.xlu0 %1224
    %v1227 = vmul.f32 %v1221, %v1225
    %1229 = vrot.lane.b32.xlu0 %v1227, 32
    %v1230 = vpop.permute.xlu0 %1229
    %v1232 = vadd.f32 %v1222, %v1230
    %v1233 = vtanh.pop %v1232
    %1235 = vrot.lane.b32.xlu0 %v1233, 64
    %v1236 = vpop.permute.xlu0 %1235
    %v1238 = vmul.f32 %v1221, %v1236
    %1240 = vrot.lane.b32.xlu0 %v1169, 32
    %v1241 = vpop.permute.xlu0 %1240
    %1243 = vst.msk [vmem:[#allocation2] sm:$0xff] %vm280, %v1241
    %1245 = vrot.lane.b32.xlu0 %v1238, 64
    %v1246 = vpop.permute.xlu0 %1245
    %1248 = vst.msk [vmem:[#allocation2] sm:$0xff] %vm359, %v1246
    %v1249 = vld [vmem:[#allocation2] sm:$0xff]
    %v1250 = vpack.c.bf16 %v1249, %v1249
    %v1252 = vsel %vm189, %v1250, 0
    %1254 = vmatprep.subr.bf16.mxu0 0
    %1255 = vmatpush1.bf16.msra.mxu0 0
    %1256 = vmatprep.subr.bf16.mxu0 0
    %1257 = vmatpush1.bf16.msra.mxu0 0
    %1258 = vmatprep.subr.bf16.mxu0 0
    %1259 = vmatpush1.bf16.msra.mxu0 0
    %1260 = vmatprep.subr.bf16.mxu0 0
    %1261 = vmatpush1.bf16.msra.mxu0 0
    %1262 = vmatprep.subr.bf16.mxu0 %v77
    %1263 = vmatpush1.bf16.msra.mxu0 %v53
    %1264 = vmatprep.subr.bf16.mxu0 %v76
    %1265 = vmatpush1.bf16.msra.mxu0 %v52
    %1266 = vmatprep.subr.bf16.mxu0 %v75
    %1267 = vmatpush1.bf16.msra.mxu0 %v51
    %1268 = vmatprep.subr.bf16.mxu0 %v74
    %1269 = vmatpush1.bf16.msra.mxu0 %v50
    %1270 = vmatprep.subr.bf16.mxu0 0
    %1271 = vmatpush2.bf16.msra.mxu0 0
    %1272 = vmatprep.subr.bf16.mxu0 0
    %1273 = vmatpush2.bf16.msra.mxu0 0
    %1274 = vmatprep.subr.bf16.mxu0 0
    %1275 = vmatpush2.bf16.msra.mxu0 0
    %1276 = vmatprep.subr.bf16.mxu0 0
    %1277 = vmatpush2.bf16.msra.mxu0 0
    %1278 = vmatprep.subr.bf16.mxu0 0
    %1279 = vmatpush2.bf16.msra.mxu0 0
    %1280 = vmatprep.subr.bf16.mxu0 0
    %1281 = vmatpush2.bf16.msra.mxu0 0
    %1282 = vmatprep.subr.bf16.mxu0 0
    %1283 = vmatpush2.bf16.msra.mxu0 0
    %1284 = vmatprep.subr.bf16.mxu0 0
    %1285 = vmatpush2.bf16.msra.mxu0 0
    %1286 = vmatprep.mubr.bf16.mxu0 0
    %1287 = vmatmul.mubr.bf16.gmra.mxu0 %v1252
    %v1288 = vpop.f32.mrf.mxu0
    %v1289 = vadd.f32 0.0, %v1288
    %v1290 = vpop.f32.mrf.mxu0
    %v1291 = vadd.f32 0.0, %v1290
    %v1292 = vpop.f32.mrf.mxu0
    %v1293 = vpop.f32.mrf.mxu0
    %1294 = vdwg.mxu0
    %v1295 = vadd.f32 %v181, %v1289
    %v1296 = vadd.f32 %v1295, %v241
    %v1297 = vtanh.pop %v1296
    %v1298 = vmul.f32 %v1297, 0.5
    %v1299 = vadd.f32 %v1298, 0.5
    %v1300 = vsel %vm188, %v1297, %v1299
    %v1301 = vmul.f32 %v1300, %v1163
    %1303 = vrot.lane.b32.xlu0 %v1300, 64
    %v1304 = vpop.permute.xlu0 %1303
    %v1306 = vmul.f32 %v1300, %v1304
    %1308 = vrot.lane.b32.xlu0 %v1306, 32
    %v1309 = vpop.permute.xlu0 %1308
    %v1311 = vadd.f32 %v1301, %v1309
    %v1312 = vtanh.pop %v1311
    %1314 = vrot.lane.b32.xlu0 %v1312, 64
    %v1315 = vpop.permute.xlu0 %1314
    %v1317 = vmul.f32 %v1300, %v1315
    %v1318 = vpack.c.bf16 %v1317, %v1317
    %1320 = vrot.lane.b32.xlu0 %v1318, 32
    %v1321 = vpop.permute.xlu0 %1320
    %v1323 = vsel %vm280, %v1321, 0
    %1325 = vmatprep.subr.bf16.mxu0 0
    %1326 = vmatpush1.bf16.msra.mxu0 0
    %1327 = vmatprep.subr.bf16.mxu0 0
    %1328 = vmatpush1.bf16.msra.mxu0 0
    %1329 = vmatprep.subr.bf16.mxu0 0
    %1330 = vmatpush1.bf16.msra.mxu0 0
    %1331 = vmatprep.subr.bf16.mxu0 0
    %1332 = vmatpush1.bf16.msra.mxu0 0
    %1333 = vmatprep.subr.bf16.mxu0 0
    %1334 = vmatpush1.bf16.msra.mxu0 0
    %1335 = vmatprep.subr.bf16.mxu0 0
    %1336 = vmatpush1.bf16.msra.mxu0 0
    %1337 = vmatprep.subr.bf16.mxu0 0
    %1338 = vmatpush1.bf16.msra.mxu0 %v277
    %1339 = vmatprep.subr.bf16.mxu0 0
    %1340 = vmatpush1.bf16.msra.mxu0 %v276
    %1341 = vmatprep.subr.bf16.mxu0 0
    %1342 = vmatpush2.bf16.msra.mxu0 0
    %1343 = vmatprep.subr.bf16.mxu0 0
    %1344 = vmatpush2.bf16.msra.mxu0 0
    %1345 = vmatprep.subr.bf16.mxu0 0
    %1346 = vmatpush2.bf16.msra.mxu0 0
    %1347 = vmatprep.subr.bf16.mxu0 0
    %1348 = vmatpush2.bf16.msra.mxu0 0
    %1349 = vmatprep.subr.bf16.mxu0 0
    %1350 = vmatpush2.bf16.msra.mxu0 0
    %1351 = vmatprep.subr.bf16.mxu0 0
    %1352 = vmatpush2.bf16.msra.mxu0 0
    %1353 = vmatprep.subr.bf16.mxu0 0
    %1354 = vmatpush2.bf16.msra.mxu0 0
    %1355 = vmatprep.subr.bf16.mxu0 0
    %1356 = vmatpush2.bf16.msra.mxu0 0
    %1357 = vmatprep.mubr.bf16.mxu0 0
    %1358 = vmatmul.mubr.bf16.gmra.mxu0 %v1323
    %v1359 = vpop.f32.mrf.mxu0
    %v1360 = vadd.f32 %v1291, %v1359
    %v1361 = vpop.f32.mrf.mxu0
    %v1362 = vpop.f32.mrf.mxu0
    %v1363 = vpop.f32.mrf.mxu0
    %1364 = vdwg.mxu0
    %v1365 = vadd.f32 %v1360, %v327
    %v1366 = vtanh.pop %v1365
    %v1367 = vmul.f32 %v1366, 0.5
    %v1368 = vadd.f32 %v1367, 0.5
    %v1369 = vsel %vm188, %v1366, %v1368
    %v1370 = vmul.f32 %v1369, %v1232
    %1372 = vrot.lane.b32.xlu0 %v1369, 64
    %v1373 = vpop.permute.xlu0 %1372
    %v1375 = vmul.f32 %v1369, %v1373
    %1377 = vrot.lane.b32.xlu0 %v1375, 32
    %v1378 = vpop.permute.xlu0 %1377
    %v1380 = vadd.f32 %v1370, %v1378
    %v1381 = vtanh.pop %v1380
    %1383 = vrot.lane.b32.xlu0 %v1381, 64
    %v1384 = vpop.permute.xlu0 %1383
    %v1386 = vmul.f32 %v1369, %v1384
    %1388 = vrot.lane.b32.xlu0 %v1317, 32
    %v1389 = vpop.permute.xlu0 %1388
    %1391 = vst.msk [vmem:[#allocation2] sm:$0xff] %vm280, %v1389
    %1393 = vrot.lane.b32.xlu0 %v1386, 64
    %v1394 = vpop.permute.xlu0 %1393
    %1396 = vst.msk [vmem:[#allocation2] sm:$0xff] %vm359, %v1394
    %v1397 = vpack.c.bf16 %v1386, %v1386
    %v1398 = vld [vmem:[%s1 + $0x58] sm:$0xf]
    %v1399 = vld [vmem:[%s1 + $0x5c] sm:$0xf]
    %v1400 = vld [vmem:[%s1 + $0x60] sm:$0xf]
    %v1401 = vld [vmem:[%s1 + $0x64] sm:$0xf]
    %v1402 = vld [vmem:[%s1 + $0x68] sm:$0xf]
    %v1403 = vld [vmem:[%s1 + $0x6c] sm:$0xf]
    %v1404 = vld [vmem:[%s1 + $0x70] sm:$0xf]
    %v1405 = vld [vmem:[%s1 + $0x74] sm:$0xf]
    %v1406 = vld [vmem:[%s2 + $0x2] sm:$0x1]
    %v1407 = vld [vmem:[%s2 + $0x3] sm:$0x1]
    %v1408 = vld [vmem:[%s2 + $0x4] sm:$0x1]
    %v1409 = vld [vmem:[%s2 + $0x5] sm:$0x1]
    %v1410 = vld [vmem:[%s2 + $0x6] sm:$0x1]
    %v1411 = vld [vmem:[%s2 + $0x7] sm:$0x1]
    %v1412 = vlaneseq
    %v1413 = vshrl.u32 %v1412, 7
    %v1414 = vsub.s32 0, %v1413
    %v1415 = vrot.slane %v1406, %v1414
    %1417 = vrot.lane.b32.xlu0 %v1397, 32
    %v1418 = vpop.permute.xlu0 %1417
    %v1423 = vunpack.c.l.b16 %v1398
    %v1424 = vunpack.c.l.b16 %v1399
    %v1425 = vunpack.c.l.b16 %v1400
    %v1426 = vunpack.c.l.b16 %v1401
    %v1427 = vpack.c.b16 %v1424, %v1423
    %v1428 = vpack.c.b16 %v1426, %v1425
    %v1432 = vsel %vm280, %v1418, 0
    %1434 = vmatprep.subr.bf16.mxu0 0
    %1435 = vmatpush1.bf16.msra.mxu0 0
    %1436 = vmatprep.subr.bf16.mxu0 0
    %1437 = vmatpush1.bf16.msra.mxu0 0
    %1438 = vmatprep.subr.bf16.mxu0 0
    %1439 = vmatpush1.bf16.msra.mxu0 0
    %1440 = vmatprep.subr.bf16.mxu0 0
    %1441 = vmatpush1.bf16.msra.mxu0 0
    %1442 = vmatprep.subr.bf16.mxu0 0
    %1443 = vmatpush1.bf16.msra.mxu0 0
    %1444 = vmatprep.subr.bf16.mxu0 0
    %1445 = vmatpush1.bf16.msra.mxu0 0
    %1446 = vmatprep.subr.bf16.mxu0 0
    %1447 = vmatpush1.bf16.msra.mxu0 %v1428
    %1448 = vmatprep.subr.bf16.mxu0 0
    %1449 = vmatpush1.bf16.msra.mxu0 %v1427
    %1450 = vmatprep.subr.bf16.mxu0 0
    %1451 = vmatpush2.bf16.msra.mxu0 0
    %1452 = vmatprep.subr.bf16.mxu0 0
    %1453 = vmatpush2.bf16.msra.mxu0 0
    %1454 = vmatprep.subr.bf16.mxu0 0
    %1455 = vmatpush2.bf16.msra.mxu0 0
    %1456 = vmatprep.subr.bf16.mxu0 0
    %1457 = vmatpush2.bf16.msra.mxu0 0
    %1458 = vmatprep.subr.bf16.mxu0 0
    %1459 = vmatpush2.bf16.msra.mxu0 0
    %1460 = vmatprep.subr.bf16.mxu0 0
    %1461 = vmatpush2.bf16.msra.mxu0 0
    %1462 = vmatprep.subr.bf16.mxu0 0
    %1463 = vmatpush2.bf16.msra.mxu0 0
    %1464 = vmatprep.subr.bf16.mxu0 0
    %1465 = vmatpush2.bf16.msra.mxu0 0
    %1466 = vmatprep.mubr.bf16.mxu0 0
    %1467 = vmatmul.mubr.bf16.gmra.mxu0 %v1432
    %v1468 = vpop.f32.mrf.mxu0
    %v1469 = vadd.f32 %v1415, %v1468
    %v1470 = vpop.f32.mrf.mxu0
    %v1471 = vpop.f32.mrf.mxu0
    %v1472 = vpop.f32.mrf.mxu0
    %1473 = vdwg.mxu0
    %v1474 = vpack.c.bf16 %v1469, %v1469
    %v1475 = vpack.c.bf16 %v1408, %v1408
    %1476 = vmatprep.subr.bf16.mxu0 0
    %1477 = vmatpush1.bf16.xpose.msra.mxu0 0
    %1478 = vmatprep.subr.bf16.mxu0 0
    %1479 = vmatpush1.bf16.xpose.msra.mxu0 0
    %1480 = vmatprep.subr.bf16.mxu0 0
    %1481 = vmatpush1.bf16.xpose.msra.mxu0 0
    %1482 = vmatprep.subr.bf16.mxu0 0
    %1483 = vmatpush1.bf16.xpose.msra.mxu0 0
    %1484 = vmatprep.subr.bf16.mxu0 0
    %1485 = vmatpush1.bf16.xpose.msra.mxu0 0
    %1486 = vmatprep.subr.bf16.mxu0 0
    %1487 = vmatpush1.bf16.xpose.msra.mxu0 0
    %1488 = vmatprep.subr.bf16.mxu0 0
    %1489 = vmatpush1.bf16.xpose.msra.mxu0 0
    %1490 = vmatprep.subr.bf16.mxu0 0
    %1491 = vmatpush1.bf16.xpose.msra.mxu0 %v1474
    %1492 = vmatprep.subr.bf16.mxu0 0
    %1493 = vmatpush2.bf16.xpose.msra.mxu0 0
    %1494 = vmatprep.subr.bf16.mxu0 0
    %1495 = vmatpush2.bf16.xpose.msra.mxu0 0
    %1496 = vmatprep.subr.bf16.mxu0 0
    %1497 = vmatpush2.bf16.xpose.msra.mxu0 0
    %1498 = vmatprep.subr.bf16.mxu0 0
    %1499 = vmatpush2.bf16.xpose.msra.mxu0 0
    %1500 = vmatprep.subr.bf16.mxu0 0
    %1501 = vmatpush2.bf16.xpose.msra.mxu0 0
    %1502 = vmatprep.subr.bf16.mxu0 0
    %1503 = vmatpush2.bf16.xpose.msra.mxu0 0
    %1504 = vmatprep.subr.bf16.mxu0 0
    %1505 = vmatpush2.bf16.xpose.msra.mxu0 0
    %1506 = vmatprep.subr.bf16.mxu0 0
    %1507 = vmatpush2.bf16.xpose.msra.mxu0 0
    %1508 = vmatprep.mubr.bf16.mxu0 0
    %1509 = vmatmul.mubr.bf16.gmra.mxu0 %v1475
    %v1510 = vpop.f32.mrf.mxu0
    %v1511 = vadd.f32 0.0, %v1510
    %v1512 = vpop.f32.mrf.mxu0
    %v1513 = vpop.f32.mrf.mxu0
    %v1514 = vpop.f32.mrf.mxu0
    %1515 = vdwg.mxu0
    %v1516 = vlaneseq
    %v1517 = vshrl.u32 %v1516, 7
    %v1518 = vsub.s32 0, %v1517
    %v1519 = vrot.slane %v1409, %v1518
    %v1520 = vmul.f32 %v1469, %v1519
    %1521 = vadd.xlane.f32.xlu0 %v1520
    %v1522 = vpop.xlane.xlu0 %1521
    %v1523 = vlaneseq
    %v1524 = vshrl.u32 %v1523, 7
    %v1525 = vsub.s32 0, %v1524
    %v1526 = vrot.slane %v1511, %v1525
    %v1527 = vadd.f32 %v1522, %v1526
    %vm1528 = vcmp.ge.f32.partialorder %v1527, 0.0
    %v1529 = vmul.f32 %v1527, 0.01
    %v1530 = vsel %vm1528, %v1527, %v1529
    %vm1531 = vcmask 64512
    %v1532 = vsel %vm1531, %v1530, -inf
    %1533 = vmax.xlane.f32.xlu0 %v1532
    %v1534 = vpop.xlane.xlu0 %1533
    %v1535 = vsub.f32 %v1530, %v1534
    %v1536 = vmul.f32 %v1535, 1.442695
    %v1537 = vpow.pop %v1536
    %v1538 = vsel %vm1531, %v1537, 0.0
    %1539 = vadd.xlane.f32.xlu0 %v1538
    %v1540 = vpop.xlane.xlu0 %1539
    %v1541 = vrcp.pop %v1540
    %v1542 = vmul.f32 %v1537, %v1541
    %v1543 = vpack.c.bf16 %v1542, %v1542
    %1544 = vrot.lane.b32.xlu0 %v1386, 32
    %v1545 = vpop.permute.xlu0 %1544
    %v1548 = vsel %vm1531, %v1543, 0
    %vm1550 = vcmask 1043456
    %v1551 = vsel %vm1550, %v1418, 0
    %1553 = vmatprep.subr.bf16.mxu0 0
    %1554 = vmatpush1.bf16.msra.mxu0 0
    %1555 = vmatprep.subr.bf16.mxu0 0
    %1556 = vmatpush1.bf16.msra.mxu0 0
    %1557 = vmatprep.subr.bf16.mxu0 0
    %1558 = vmatpush1.bf16.msra.mxu0 0
    %1559 = vmatprep.subr.bf16.mxu0 0
    %1560 = vmatpush1.bf16.msra.mxu0 0
    %1561 = vmatprep.subr.bf16.mxu0 0
    %1562 = vmatpush1.bf16.msra.mxu0 0
    %1563 = vmatprep.subr.bf16.mxu0 0
    %1564 = vmatpush1.bf16.msra.mxu0 0
    %1565 = vmatprep.subr.bf16.mxu0 0
    %1566 = vmatpush1.bf16.msra.mxu0 0
    %1567 = vmatprep.subr.bf16.mxu0 0
    %1568 = vmatpush1.bf16.msra.mxu0 %v1551
    %1569 = vmatprep.subr.bf16.mxu0 0
    %1570 = vmatpush2.bf16.msra.mxu0 0
    %1571 = vmatprep.subr.bf16.mxu0 0
    %1572 = vmatpush2.bf16.msra.mxu0 0
    %1573 = vmatprep.subr.bf16.mxu0 0
    %1574 = vmatpush2.bf16.msra.mxu0 0
    %1575 = vmatprep.subr.bf16.mxu0 0
    %1576 = vmatpush2.bf16.msra.mxu0 0
    %1577 = vmatprep.subr.bf16.mxu0 0
    %1578 = vmatpush2.bf16.msra.mxu0 0
    %1579 = vmatprep.subr.bf16.mxu0 0
    %1580 = vmatpush2.bf16.msra.mxu0 0
    %1581 = vmatprep.subr.bf16.mxu0 0
    %1582 = vmatpush2.bf16.msra.mxu0 0
    %1583 = vmatprep.subr.bf16.mxu0 0
    %1584 = vmatpush2.bf16.msra.mxu0 0
    %1585 = vmatprep.mubr.bf16.mxu0 0
    %1586 = vmatmul.mubr.bf16.gmra.mxu0 %v1548
    %v1587 = vpop.f32.mrf.mxu0
    %v1588 = vadd.f32 %v1545, %v1587
    %v1589 = vpop.f32.mrf.mxu0
    %v1590 = vpop.f32.mrf.mxu0
    %v1591 = vpop.f32.mrf.mxu0
    %1592 = vdwg.mxu0
    %v1593 = vpack.c.bf16 %v1588, %v1588
    %v1594 = vlaneseq
    %v1595 = vshrl.u32 %v1594, 7
    %v1596 = vsub.s32 0, %v1595
    %v1597 = vrot.slane %v1407, %v1596
    %v1602 = vunpack.c.l.b16 %v1402
    %v1603 = vunpack.c.l.b16 %v1403
    %v1604 = vunpack.c.l.b16 %v1404
    %v1605 = vunpack.c.l.b16 %v1405
    %v1606 = vpack.c.b16 %v1603, %v1602
    %v1607 = vpack.c.b16 %v1605, %v1604
    %v1611 = vsel %vm280, %v1593, 0
    %1613 = vmatprep.subr.bf16.mxu0 0
    %1614 = vmatpush1.bf16.msra.mxu0 0
    %1615 = vmatprep.subr.bf16.mxu0 0
    %1616 = vmatpush1.bf16.msra.mxu0 0
    %1617 = vmatprep.subr.bf16.mxu0 0
    %1618 = vmatpush1.bf16.msra.mxu0 0
    %1619 = vmatprep.subr.bf16.mxu0 0
    %1620 = vmatpush1.bf16.msra.mxu0 0
    %1621 = vmatprep.subr.bf16.mxu0 0
    %1622 = vmatpush1.bf16.msra.mxu0 0
    %1623 = vmatprep.subr.bf16.mxu0 0
    %1624 = vmatpush1.bf16.msra.mxu0 0
    %1625 = vmatprep.subr.bf16.mxu0 0
    %1626 = vmatpush1.bf16.msra.mxu0 %v1607
    %1627 = vmatprep.subr.bf16.mxu0 0
    %1628 = vmatpush1.bf16.msra.mxu0 %v1606
    %1629 = vmatprep.subr.bf16.mxu0 0
    %1630 = vmatpush2.bf16.msra.mxu0 0
    %1631 = vmatprep.subr.bf16.mxu0 0
    %1632 = vmatpush2.bf16.msra.mxu0 0
    %1633 = vmatprep.subr.bf16.mxu0 0
    %1634 = vmatpush2.bf16.msra.mxu0 0
    %1635 = vmatprep.subr.bf16.mxu0 0
    %1636 = vmatpush2.bf16.msra.mxu0 0
    %1637 = vmatprep.subr.bf16.mxu0 0
    %1638 = vmatpush2.bf16.msra.mxu0 0
    %1639 = vmatprep.subr.bf16.mxu0 0
    %1640 = vmatpush2.bf16.msra.mxu0 0
    %1641 = vmatprep.subr.bf16.mxu0 0
    %1642 = vmatpush2.bf16.msra.mxu0 0
    %1643 = vmatprep.subr.bf16.mxu0 0
    %1644 = vmatpush2.bf16.msra.mxu0 0
    %1645 = vmatprep.mubr.bf16.mxu0 0
    %1646 = vmatmul.mubr.bf16.gmra.mxu0 %v1611
    %v1647 = vpop.f32.mrf.mxu0
    %v1648 = vadd.f32 %v1597, %v1647
    %v1649 = vpop.f32.mrf.mxu0
    %v1650 = vpop.f32.mrf.mxu0
    %v1651 = vpop.f32.mrf.mxu0
    %1652 = vdwg.mxu0
    %vm1653 = vcmp.ge.f32.partialorder %v1648, 0.0
    %v1654 = vmul.f32 %v1648, 0.01
    %v1655 = vsel %vm1653, %v1648, %v1654
    %v1656 = vpack.c.bf16 %v1410, %v1410
    %v1657 = vpack.c.bf16 %v1655, %v1655
    %1659 = vset.pattern.permute.xlu0 0
    %1660 = vperm.xlu0 %1659, %v1411
    %v1661 = vpop.permute.xlu0 %1660
    %1663 = vmatprep.subr.bf16.mxu0 0
    %1664 = vmatpush1.bf16.xpose.msra.mxu0 0
    %1665 = vmatprep.subr.bf16.mxu0 0
    %1666 = vmatpush1.bf16.xpose.msra.mxu0 0
    %1667 = vmatprep.subr.bf16.mxu0 0
    %1668 = vmatpush1.bf16.xpose.msra.mxu0 0
    %1669 = vmatprep.subr.bf16.mxu0 0
    %1670 = vmatpush1.bf16.xpose.msra.mxu0 0
    %1671 = vmatprep.subr.bf16.mxu0 0
    %1672 = vmatpush1.bf16.xpose.msra.mxu0 0
    %1673 = vmatprep.subr.bf16.mxu0 0
    %1674 = vmatpush1.bf16.xpose.msra.mxu0 0
    %1675 = vmatprep.subr.bf16.mxu0 0
    %1676 = vmatpush1.bf16.xpose.msra.mxu0 0
    %1677 = vmatprep.subr.bf16.mxu0 0
    %1678 = vmatpush1.bf16.xpose.msra.mxu0 %v1657
    %1679 = vmatprep.subr.bf16.mxu0 0
    %1680 = vmatpush2.bf16.xpose.msra.mxu0 0
    %1681 = vmatprep.subr.bf16.mxu0 0
    %1682 = vmatpush2.bf16.xpose.msra.mxu0 0
    %1683 = vmatprep.subr.bf16.mxu0 0
    %1684 = vmatpush2.bf16.xpose.msra.mxu0 0
    %1685 = vmatprep.subr.bf16.mxu0 0
    %1686 = vmatpush2.bf16.xpose.msra.mxu0 0
    %1687 = vmatprep.subr.bf16.mxu0 0
    %1688 = vmatpush2.bf16.xpose.msra.mxu0 0
    %1689 = vmatprep.subr.bf16.mxu0 0
    %1690 = vmatpush2.bf16.xpose.msra.mxu0 0
    %1691 = vmatprep.subr.bf16.mxu0 0
    %1692 = vmatpush2.bf16.xpose.msra.mxu0 0
    %1693 = vmatprep.subr.bf16.mxu0 0
    %1694 = vmatpush2.bf16.xpose.msra.mxu0 0
    %1695 = vmatprep.mubr.bf16.mxu0 0
    %1696 = vmatmul.mubr.bf16.gmra.mxu0 %v1656
    %v1697 = vpop.f32.mrf.mxu0
    %v1698 = vadd.f32 %v1661, %v1697
    %v1699 = vpop.f32.mrf.mxu0
    %v1700 = vpop.f32.mrf.mxu0
    %v1701 = vpop.f32.mrf.mxu0
    %1702 = vdwg.mxu0
    %vm1703 = vcmask 57344
    %1704 = vst.msk [vmem:[#allocation3] sm:$0x1] %vm1703, %v1698
    // Predicated region
    $region14: #{gat_model_forward.1} parent=1 // pred_check
      _
    $region15: #{gat_model_forward.1} parent=1 // pred_check_branch
      %1706 = sbr.rel (0) target = $region17
    $region16: #{gat_model_forward.1} parent=1 // pred_region
      %s1708 = ssub.s32 16, 16
      %1709 = vsyncadd [#allocation4], %s1708
      %s1711 = sshll.u32 [#allocation3], 4
      %s1712 = int_to_ptr.vmem [resolvable:$true] %s1711
      %1714 = dma.vmem_to_hbm [thread:$0]  %s1712, 16, %s3, [#allocation4]
    $region17: #{gat_model_forward.1} parent=1 // pred_fallthru
      _
    // Predicated region
    $region18: #{gat_model_forward.1} parent=1 // pred_check
      _
    $region19: #{gat_model_forward.1} parent=1 // pred_check_branch
      %1716 = sbr.rel (0) target = $region21
    $region20: #{gat_model_forward.1} parent=1 // pred_region
      %1717 = dma.done [#allocation4], 16
    $region21: #{gat_model_forward.1} parent=1 // pred_fallthru
      _
    %1718 = vsyncpa [#allocation4], 1

</llo_original>
